<compile_context>
chip_gen: v6e
topology: v6e:2x2x1
jax: 0.10.0
libtpu: 0.0.40
codegen_flags: <defaults>
</compile_context>

<pallas_src>
import functools
import math

import numpy as np
import jax
import jax.numpy as jnp
from jax import lax
from jax.experimental import pallas as pl
from jax.experimental.pallas import tpu as pltpu


def _block_kernel(x_ref, g1_ref, be1_ref, g2_ref, be2_ref,
                  wqkv_ref, bqkv_ref, wo_ref, bo_ref,
                  w1_ref, bf1_ref, w2_ref, bf2_ref,
                  cos_ref, sin_ref,
                  o_ref,
                  att_ref, *, n_heads):
    f32 = jnp.float32
    bf16 = jnp.bfloat16
    T, D = x_ref.shape
    TQ = o_ref.shape[0]
    hd = D // n_heads
    eps = 1e-5
    inv_sqrt_hd = 1.0 / math.sqrt(hd)

    qi = pl.program_id(1)
    q0 = pl.multiple_of(qi * TQ, TQ)

    def layernorm(v, g, b):
        mu = jnp.mean(v, axis=-1, keepdims=True)
        var = jnp.mean((v - mu) ** 2, axis=-1, keepdims=True)
        return (v - mu) * lax.rsqrt(var + eps) * g + b

    def lane_tile(a):
        # (rows, head_dim) -> (rows, D): every head shares the same rotary table.
        return jnp.concatenate([a] * n_heads, axis=-1)

    g1 = g1_ref[...]
    be1 = be1_ref[...]

    # ---- pre-LN 1 (full seq for K/V, q-tile rows for Q / residual) ----
    x_full = x_ref[...]                             # (T, D) f32
    x_q = x_ref[pl.ds(q0, TQ), :]                   # (TQ, D) f32
    h_full = layernorm(x_full, g1, be1).astype(bf16)
    h_q = layernorm(x_q, g1, be1).astype(bf16)

    def proj(h_bf, col0):
        # Chunked consumption of the fused (D, 5D) weight: one D-wide slice at a
        # time keeps peak live projection width ~2*D instead of 5*D.
        w = wqkv_ref[:, col0:col0 + D]
        b = bqkv_ref[:, col0:col0 + D]
        return jnp.dot(h_bf, w, preferred_element_type=f32) + b

    cos_k = lane_tile(cos_ref[...])                 # (T, D)
    sin_k = lane_tile(sin_ref[...])
    cos_q = lane_tile(cos_ref[pl.ds(q0, TQ), :])    # (TQ, D)
    sin_q = lane_tile(sin_ref[pl.ds(q0, TQ), :])

    # Rotary even/odd selection is folded into the weights host-side, so the
    # rotation is just a cos/sin mix of two projections.  1/sqrt(hd) is folded
    # into q once instead of scaling every (TQ, T) score tile.
    q_c = proj(h_q, 0 * D)
    q_s = proj(h_q, 1 * D)
    rq = ((q_c * cos_q + q_s * sin_q) * inv_sqrt_hd).astype(bf16)   # (TQ, D)
    k_c = proj(h_full, 2 * D)
    k_s = proj(h_full, 3 * D)
    rk = (k_c * cos_k + k_s * sin_k).astype(bf16)                   # (T, D)
    v = proj(h_full, 4 * D).astype(bf16)                            # (T, D)

    # ---- causal mask fused at point of use (boolean, no (T,T) f32 array) ----
    row = q0 + lax.broadcasted_iota(jnp.int32, (TQ, T), 0)
    col = lax.broadcasted_iota(jnp.int32, (TQ, T), 1)
    causal = col <= row

    # ---- per-head attention; outputs written straight into VMEM scratch ----
    # TODO(synk): for long T add a KV-chunk loop with online softmax (live
    # scores (TQ, tk)); pack heads / use head_dim=128 to fill MXU depth on v6e/v7x.
    for hi in range(n_heads):
        lo = hi * hd
        qh = rq[:, lo:lo + hd]
        kh = rk[:, lo:lo + hd]
        vh = v[:, lo:lo + hd]
        sc = lax.dot_general(qh, kh, (((1,), (1,)), ((), ())),
                             preferred_element_type=f32)            # (TQ, T)
        sc = jnp.where(causal, sc, -jnp.inf)
        sc = sc - jnp.max(sc, axis=-1, keepdims=True)
        p = jnp.exp(sc)
        p = p * pl.reciprocal(jnp.sum(p, axis=-1, keepdims=True), approx=True)
        # TODO(synk): attention / FFN dropout are identity (eval mode), no RNG.
        att_ref[:, lo:lo + hd] = jnp.dot(p.astype(bf16), vh,
                                         preferred_element_type=f32)

    att = att_ref[...].astype(bf16)                                  # (TQ, D)
    att_out = jnp.dot(att, wo_ref[...], preferred_element_type=f32) + bo_ref[...]
    y = x_q + att_out                                                # residual 1

    # ---- pre-LN 2 + FFN (Linear -> exact GELU -> Linear) ----
    h2 = layernorm(y, g2_ref[...], be2_ref[...]).astype(bf16)
    z = jnp.dot(h2, w1_ref[...], preferred_element_type=f32) + bf1_ref[...]
    z = 0.5 * z * (1.0 + lax.erf(z * (1.0 / math.sqrt(2.0))))        # nn.GELU exact
    f = jnp.dot(z.astype(bf16), w2_ref[...], preferred_element_type=f32) + bf2_ref[...]

    o_ref[...] = (y + f).astype(o_ref.dtype)                         # residual 2


def transformer_block(x, params, *, n_heads, q_tile=128):
    B, T, D = x.shape
    hd = D // n_heads
    half = hd // 2
    assert D % n_heads == 0 and hd % 2 == 0
    H = params["w1"].shape[1]

    TQ = T if T <= q_tile else q_tile
    assert T % TQ == 0, "sequence length must be a multiple of the query tile"
    n_q = T // TQ

    # Rotary tables stored once per head_dim (all heads identical): (T, hd),
    # per-head layout [cos(ang), cos(ang)] / [sin(ang), sin(ang)].
    theta = 1.0 / (10000.0 ** (np.arange(half, dtype=np.float32) / half))
    ang = np.arange(T, dtype=np.float32)[:, None] * theta[None, :]        # (T, half)
    cos_hd = np.concatenate([np.cos(ang), np.cos(ang)], axis=-1)          # (T, hd)
    sin_hd = np.concatenate([np.sin(ang), np.sin(ang)], axis=-1)

    # Rotary even/odd selection as signed column permutations, folded into the
    # Q/K weights HOST-SIDE (no permutation matmuls on the MXU).
    A = np.zeros((D, D), np.float32)
    Bm = np.zeros((D, D), np.float32)
    for h in range(n_heads):
        base = h * hd
        for j in range(half):
            A[base + 2 * j, base + j] = 1.0               # x1 -> first half
            A[base + 2 * j + 1, base + half + j] = 1.0    # x2 -> second half
            Bm[base + 2 * j + 1, base + j] = -1.0         # -x2 -> first half
            Bm[base + 2 * j, base + half + j] = 1.0       # x1 -> second half

    wq = np.asarray(params["wq"], np.float32); bq = np.asarray(params["bq"], np.float32)
    wk = np.asarray(params["wk"], np.float32); bk = np.asarray(params["bk"], np.float32)
    wv = np.asarray(params["wv"], np.float32); bv = np.asarray(params["bv"], np.float32)
    # Fused projection columns: [q*cos-part, q*sin-part, k*cos-part, k*sin-part, v]
    w_qkv = np.concatenate([wq @ A, wq @ Bm, wk @ A, wk @ Bm, wv], axis=1)   # (D, 5D)
    b_qkv = np.concatenate([bq @ A, bq @ Bm, bk @ A, bk @ Bm, bv], axis=1)   # (1, 5D)

    f32 = jnp.float32
    bf16 = jnp.bfloat16
    inputs = (
        x.astype(f32),
        params["g1"].astype(f32), params["b1"].astype(f32),
        params["g2"].astype(f32), params["b2"].astype(f32),
        jnp.asarray(w_qkv, bf16), jnp.asarray(b_qkv, f32),
        params["wo"].astype(bf16), params["bo"].astype(f32),
        params["w1"].astype(bf16), params["bf1"].astype(f32),
        params["w2"].astype(bf16), params["bf2"].astype(f32),
        jnp.asarray(cos_hd, f32), jnp.asarray(sin_hd, f32),
    )

    # TODO(synk): at deployed sizes tile w1/w2 over H with an extra 'arbitrary'
    # grid axis (FFN accumulator) so double-buffered weights fit v7x's 64 MiB
    # VMEM; fp8 weights on v7x would halve weight VMEM/DMA again.
    def const_spec(a):
        nd = a.ndim
        return pl.BlockSpec(a.shape, lambda b, q, _nd=nd: (0,) * _nd)

    in_specs = [pl.BlockSpec((None, T, D), lambda b, q: (b, 0, 0))] + \
               [const_spec(a) for a in inputs[1:]]
    out_spec = pl.BlockSpec((None, TQ, D), lambda b, q: (b, q, 0))

    # Explicit scoped-VMEM budget (defaults are only 16/32 MiB): resident
    # weights (double-buffered by the default pipeline) + activation tiles +
    # scratch, clamped to the chip's physical VMEM with headroom.
    weight_bytes = sum(int(np.prod(a.shape)) * a.dtype.itemsize for a in inputs[1:])
    act_bytes = (T * D + 2 * TQ * D) * 4 + 5 * T * D * 4 + TQ * D * 4
    est = int(2.5 * weight_bytes + 3 * act_bytes) + (4 << 20)
    try:
        phys_vmem = int(pltpu.get_tpu_info().vmem_capacity_bytes)
    except Exception:
        phys_vmem = 64 << 20   # v7x lower bound; query is advisory only
    vmem_limit = max(32 << 20, min(est, int(phys_vmem * 0.85)))

    # Advisory cost estimate so XLA can overlap surrounding ops with this call.
    flops = int(B * (2 * T * D * D * 2                   # q_cos, q_sin projections
                     + n_q * 2 * T * D * D * 3           # k_cos, k_sin, v per q tile
                     + n_heads * 2 * T * T * hd * 2      # QK^T + PV
                     + 2 * T * D * D                     # output projection
                     + 2 * T * D * H * 2))               # FFN
    transcendentals = int(B * (n_heads * T * T + T * H + 4 * T))
    bytes_accessed = int(2 * B * T * D * 4 + weight_bytes)

    kernel = functools.partial(_block_kernel, n_heads=n_heads)

    return pl.pallas_call(
        kernel,
        out_shape=jax.ShapeDtypeStruct((B, T, D), jnp.float32),
        grid_spec=pltpu.PrefetchScalarGridSpec(
            num_scalar_prefetch=0,
            grid=(B, n_q),
            in_specs=in_specs,
            out_specs=out_spec,
            scratch_shapes=[pltpu.VMEM((TQ, D), jnp.float32)],   # per-head att out
        ),
        compiler_params=pltpu.CompilerParams(
            dimension_semantics=("parallel", "parallel"),
            vmem_limit_bytes=vmem_limit),
        cost_estimate=pl.CostEstimate(flops=flops,
                                      transcendentals=transcendentals,
                                      bytes_accessed=bytes_accessed),
    )(*inputs)


def init_params(key, D, H):
    ks = jax.random.split(key, 6)

    def lin(k, din, dout):
        k1, k2 = jax.random.split(k)
        w = jax.random.normal(k1, (din, dout), jnp.float32) * 0.02
        b = jax.random.normal(k2, (1, dout), jnp.float32) * 0.02
        return w, b

    wq, bq = lin(ks[0], D, D)
    wk, bk = lin(ks[1], D, D)
    wv, bv = lin(ks[2], D, D)
    wo, bo = lin(ks[3], D, D)
    w1, bf1 = lin(ks[4], D, H)
    w2, bf2 = lin(ks[5], H, D)
    return dict(
        g1=jnp.ones((1, D), jnp.float32), b1=jnp.zeros((1, D), jnp.float32),
        g2=jnp.ones((1, D), jnp.float32), b2=jnp.zeros((1, D), jnp.float32),
        wq=wq, bq=bq, wk=wk, bk=bk, wv=wv, bv=bv, wo=wo, bo=bo,
        w1=w1, bf1=bf1, w2=w2, bf2=bf2,
    )


def reference(x, params, n_heads):
    """Pure-JAX f32 mirror of the PyTorch forward (eval mode)."""
    def ln(v, g, b):
        mu = v.mean(-1, keepdims=True)
        var = ((v - mu) ** 2).mean(-1, keepdims=True)
        return (v - mu) / jnp.sqrt(var + 1e-5) * g[0] + b[0]

    def rot(q):
        _, _, T, Dh = q.shape
        half = Dh // 2
        theta = 1.0 / (10000.0 ** (jnp.arange(half, dtype=jnp.float32) / half))
        ang = jnp.arange(T, dtype=jnp.float32)[:, None] * theta[None, :]
        s = jnp.sin(ang)[None, None]
        c = jnp.cos(ang)[None, None]
        x1 = q[..., 0::2]
        x2 = q[..., 1::2]
        return jnp.concatenate([x1 * c - x2 * s, x1 * s + x2 * c], axis=-1)

    B, T, D = x.shape
    hd = D // n_heads
    h = ln(x, params["g1"], params["b1"])
    Q = h @ params["wq"] + params["bq"][0]
    K = h @ params["wk"] + params["bk"][0]
    V = h @ params["wv"] + params["bv"][0]
    split = lambda t: t.reshape(B, T, n_heads, hd).transpose(0, 2, 1, 3)
    Q, K, V = split(Q), split(K), split(V)
    Q, K = rot(Q), rot(K)
    sc = Q @ K.transpose(0, 1, 3, 2)
    mask = jnp.where(jnp.arange(T)[None, :] <= jnp.arange(T)[:, None], 0.0, -jnp.inf)
    sc = (sc + mask[None, None]) / math.sqrt(hd)
    p = jax.nn.softmax(sc, axis=-1)
    out = (p @ V).transpose(0, 2, 1, 3).reshape(B, T, D)
    att = out @ params["wo"] + params["bo"][0]
    y = att + x
    h2 = ln(y, params["g2"], params["b2"])
    z = h2 @ params["w1"] + params["bf1"][0]
    z = 0.5 * z * (1.0 + jax.scipy.special.erf(z / math.sqrt(2.0)))
    f = z @ params["w2"] + params["bf2"][0]
    return y + f


if __name__ == "__main__":
    # Small toy shapes (well below the (8,128) vreg tile — perf numbers here do
    # not transfer to deployed configs, correctness does).
    B, T, D, H, n_heads = 2, 8, 32, 64, 4
    key = jax.random.PRNGKey(0)
    kx, kp = jax.random.split(key)
    x = jax.random.normal(kx, (B, T, D), jnp.float32)
    params = init_params(kp, D, H)

    out = transformer_block(x, params, n_heads=n_heads)
    out = jax.block_until_ready(out)

    ref = reference(x, params, n_heads)
    assert out.shape == (B, T, D)
    max_err = float(jnp.max(jnp.abs(out - ref)))
    # bf16 MXU operands + approx reciprocal vs f32 reference -> loosened tolerance.
    assert jnp.allclose(out, ref, atol=2e-2, rtol=2e-2), f"max_err={max_err}"
    print("KERNEL_OK")
</pallas_src>

<mosaic_0001>
module attributes {stable_mosaic.version = 11 : i64} {
  func.func @_block_kernel(%arg0: i32, %arg1: i32, %arg2: memref<1x8x32xf32, #tpu.memory_space<vmem>>, %arg3: memref<1x32xf32, #tpu.memory_space<vmem>>, %arg4: memref<1x32xf32, #tpu.memory_space<vmem>>, %arg5: memref<1x32xf32, #tpu.memory_space<vmem>>, %arg6: memref<1x32xf32, #tpu.memory_space<vmem>>, %arg7: memref<32x160xbf16, #tpu.memory_space<vmem>>, %arg8: memref<1x160xf32, #tpu.memory_space<vmem>>, %arg9: memref<32x32xbf16, #tpu.memory_space<vmem>>, %arg10: memref<1x32xf32, #tpu.memory_space<vmem>>, %arg11: memref<32x64xbf16, #tpu.memory_space<vmem>>, %arg12: memref<1x64xf32, #tpu.memory_space<vmem>>, %arg13: memref<64x32xbf16, #tpu.memory_space<vmem>>, %arg14: memref<1x32xf32, #tpu.memory_space<vmem>>, %arg15: memref<8x8xf32, #tpu.memory_space<vmem>>, %arg16: memref<8x8xf32, #tpu.memory_space<vmem>>, %arg17: memref<1x8x32xf32, #tpu.memory_space<vmem>>, %arg18: memref<8x32xf32, #tpu.memory_space<vmem>>) attributes {dimension_semantics = [#tpu.dimension_semantics<parallel>, #tpu.dimension_semantics<parallel>], iteration_bounds = array<i64: 2, 1>, scalar_prefetch = 0 : i64, scratch_operands = 1 : i64, tpu.core_type = #tpu.core_type<tc>, window_params = [{transform_indices = @transform_0, window_bounds = array<i64: 1, 8, 32>}, {pipeline_mode = #tpu.pipeline_mode<synchronous>, transform_indices = @transform_1, window_bounds = array<i64: 1, 32>}, {pipeline_mode = #tpu.pipeline_mode<synchronous>, transform_indices = @transform_2, window_bounds = array<i64: 1, 32>}, {pipeline_mode = #tpu.pipeline_mode<synchronous>, transform_indices = @transform_3, window_bounds = array<i64: 1, 32>}, {pipeline_mode = #tpu.pipeline_mode<synchronous>, transform_indices = @transform_4, window_bounds = array<i64: 1, 32>}, {pipeline_mode = #tpu.pipeline_mode<synchronous>, transform_indices = @transform_5, window_bounds = array<i64: 32, 160>}, {pipeline_mode = #tpu.pipeline_mode<synchronous>, transform_indices = @transform_6, window_bounds = array<i64: 1, 160>}, {pipeline_mode = #tpu.pipeline_mode<synchronous>, transform_indices = @transform_7, window_bounds = array<i64: 32, 32>}, {pipeline_mode = #tpu.pipeline_mode<synchronous>, transform_indices = @transform_8, window_bounds = array<i64: 1, 32>}, {pipeline_mode = #tpu.pipeline_mode<synchronous>, transform_indices = @transform_9, window_bounds = array<i64: 32, 64>}, {pipeline_mode = #tpu.pipeline_mode<synchronous>, transform_indices = @transform_10, window_bounds = array<i64: 1, 64>}, {pipeline_mode = #tpu.pipeline_mode<synchronous>, transform_indices = @transform_11, window_bounds = array<i64: 64, 32>}, {pipeline_mode = #tpu.pipeline_mode<synchronous>, transform_indices = @transform_12, window_bounds = array<i64: 1, 32>}, {pipeline_mode = #tpu.pipeline_mode<synchronous>, transform_indices = @transform_13, window_bounds = array<i64: 8, 8>}, {pipeline_mode = #tpu.pipeline_mode<synchronous>, transform_indices = @transform_14, window_bounds = array<i64: 8, 8>}, {transform_indices = @transform_15, window_bounds = array<i64: 1, 8, 32>}]} {
    %c8_i32 = arith.constant 8 : i32
    %0 = arith.muli %arg1, %c8_i32 : i32
    %1 = tpu.assume_multiple %0, 8 : i32
    %c0 = arith.constant 0 : index
    %c0_0 = arith.constant 0 : index
    %2 = vector.load %arg3[%c0, %c0_0] : memref<1x32xf32, #tpu.memory_space<vmem>>, vector<1x32xf32>
    %c0_1 = arith.constant 0 : index
    %c0_2 = arith.constant 0 : index
    %3 = vector.load %arg4[%c0_1, %c0_2] : memref<1x32xf32, #tpu.memory_space<vmem>>, vector<1x32xf32>
    %c0_3 = arith.constant 0 : index
    %c0_4 = arith.constant 0 : index
    %c0_5 = arith.constant 0 : index
    %4 = vector.load %arg2[%c0_3, %c0_4, %c0_5] : memref<1x8x32xf32, #tpu.memory_space<vmem>>, vector<1x8x32xf32>
    %5 = vector.shape_cast %4 : vector<1x8x32xf32> to vector<8x32xf32>
    %c0_6 = arith.constant 0 : index
    %6 = arith.index_cast %1 : i32 to index
    %c0_7 = arith.constant 0 : index
    %7 = vector.load %arg2[%c0_6, %6, %c0_7] : memref<1x8x32xf32, #tpu.memory_space<vmem>>, vector<1x8x32xf32>
    %8 = vector.shape_cast %7 : vector<1x8x32xf32> to vector<8x32xf32>
    %cst = arith.constant dense<0.000000e+00> : vector<8xf32>
    %9 = vector.multi_reduction <add>, %5, %cst [1] : vector<8x32xf32> to vector<8xf32>
    %10 = vector.shape_cast %9 : vector<8xf32> to vector<8x1xf32>
    %cst_8 = arith.constant 3.200000e+01 : f32
    %11 = vector.broadcast %cst_8 : f32 to vector<8x1xf32>
    %12 = arith.divf %10, %11 : vector<8x1xf32>
    %13 = vector.broadcast %12 : vector<8x1xf32> to vector<8x32xf32>
    %14 = arith.subf %5, %13 : vector<8x32xf32>
    %15 = arith.mulf %14, %14 : vector<8x32xf32>
    %cst_9 = arith.constant dense<0.000000e+00> : vector<8xf32>
    %16 = vector.multi_reduction <add>, %15, %cst_9 [1] : vector<8x32xf32> to vector<8xf32>
    %17 = vector.shape_cast %16 : vector<8xf32> to vector<8x1xf32>
    %cst_10 = arith.constant 3.200000e+01 : f32
    %18 = vector.broadcast %cst_10 : f32 to vector<8x1xf32>
    %19 = arith.divf %17, %18 : vector<8x1xf32>
    %20 = vector.broadcast %12 : vector<8x1xf32> to vector<8x32xf32>
    %21 = arith.subf %5, %20 : vector<8x32xf32>
    %cst_11 = arith.constant 9.99999974E-6 : f32
    %22 = vector.broadcast %cst_11 : f32 to vector<8x1xf32>
    %23 = arith.addf %19, %22 : vector<8x1xf32>
    %24 = math.rsqrt %23 : vector<8x1xf32>
    %25 = vector.broadcast %24 : vector<8x1xf32> to vector<8x32xf32>
    %26 = arith.mulf %21, %25 : vector<8x32xf32>
    %27 = vector.broadcast %2 : vector<1x32xf32> to vector<8x32xf32>
    %28 = arith.mulf %26, %27 : vector<8x32xf32>
    %29 = vector.broadcast %3 : vector<1x32xf32> to vector<8x32xf32>
    %30 = arith.addf %28, %29 : vector<8x32xf32>
    %31 = arith.truncf %30 : vector<8x32xf32> to vector<8x32xbf16>
    %cst_12 = arith.constant dense<0.000000e+00> : vector<8xf32>
    %32 = vector.multi_reduction <add>, %8, %cst_12 [1] : vector<8x32xf32> to vector<8xf32>
    %33 = vector.shape_cast %32 : vector<8xf32> to vector<8x1xf32>
    %cst_13 = arith.constant 3.200000e+01 : f32
    %34 = vector.broadcast %cst_13 : f32 to vector<8x1xf32>
    %35 = arith.divf %33, %34 : vector<8x1xf32>
    %36 = vector.broadcast %35 : vector<8x1xf32> to vector<8x32xf32>
    %37 = arith.subf %8, %36 : vector<8x32xf32>
    %38 = arith.mulf %37, %37 : vector<8x32xf32>
    %cst_14 = arith.constant dense<0.000000e+00> : vector<8xf32>
    %39 = vector.multi_reduction <add>, %38, %cst_14 [1] : vector<8x32xf32> to vector<8xf32>
    %40 = vector.shape_cast %39 : vector<8xf32> to vector<8x1xf32>
    %cst_15 = arith.constant 3.200000e+01 : f32
    %41 = vector.broadcast %cst_15 : f32 to vector<8x1xf32>
    %42 = arith.divf %40, %41 : vector<8x1xf32>
    %43 = vector.broadcast %35 : vector<8x1xf32> to vector<8x32xf32>
    %44 = arith.subf %8, %43 : vector<8x32xf32>
    %cst_16 = arith.constant 9.99999974E-6 : f32
    %45 = vector.broadcast %cst_16 : f32 to vector<8x1xf32>
    %46 = arith.addf %42, %45 : vector<8x1xf32>
    %47 = math.rsqrt %46 : vector<8x1xf32>
    %48 = vector.broadcast %47 : vector<8x1xf32> to vector<8x32xf32>
    %49 = arith.mulf %44, %48 : vector<8x32xf32>
    %50 = vector.broadcast %2 : vector<1x32xf32> to vector<8x32xf32>
    %51 = arith.mulf %49, %50 : vector<8x32xf32>
    %52 = vector.broadcast %3 : vector<1x32xf32> to vector<8x32xf32>
    %53 = arith.addf %51, %52 : vector<8x32xf32>
    %54 = arith.truncf %53 : vector<8x32xf32> to vector<8x32xbf16>
    %c0_17 = arith.constant 0 : index
    %c0_18 = arith.constant 0 : index
    %55 = vector.load %arg15[%c0_17, %c0_18] : memref<8x8xf32, #tpu.memory_space<vmem>>, vector<8x8xf32>
    %56 = tpu.concatenate %55, %55, %55, %55 in 1 : vector<8x8xf32>, vector<8x8xf32>, vector<8x8xf32>, vector<8x8xf32> -> vector<8x32xf32>
    %c0_19 = arith.constant 0 : index
    %c0_20 = arith.constant 0 : index
    %57 = vector.load %arg16[%c0_19, %c0_20] : memref<8x8xf32, #tpu.memory_space<vmem>>, vector<8x8xf32>
    %58 = tpu.concatenate %57, %57, %57, %57 in 1 : vector<8x8xf32>, vector<8x8xf32>, vector<8x8xf32>, vector<8x8xf32> -> vector<8x32xf32>
    %59 = arith.index_cast %1 : i32 to index
    %c0_21 = arith.constant 0 : index
    %60 = vector.load %arg15[%59, %c0_21] : memref<8x8xf32, #tpu.memory_space<vmem>>, vector<8x8xf32>
    %61 = tpu.concatenate %60, %60, %60, %60 in 1 : vector<8x8xf32>, vector<8x8xf32>, vector<8x8xf32>, vector<8x8xf32> -> vector<8x32xf32>
    %62 = arith.index_cast %1 : i32 to index
    %c0_22 = arith.constant 0 : index
    %63 = vector.load %arg16[%62, %c0_22] : memref<8x8xf32, #tpu.memory_space<vmem>>, vector<8x8xf32>
    %64 = tpu.concatenate %63, %63, %63, %63 in 1 : vector<8x8xf32>, vector<8x8xf32>, vector<8x8xf32>, vector<8x8xf32> -> vector<8x32xf32>
    %c0_23 = arith.constant 0 : index
    %c0_24 = arith.constant 0 : index
    %65 = vector.load %arg7[%c0_23, %c0_24] : memref<32x160xbf16, #tpu.memory_space<vmem>>, vector<32x32xbf16>
    %c0_25 = arith.constant 0 : index
    %c0_26 = arith.constant 0 : index
    %66 = vector.load %arg8[%c0_25, %c0_26] : memref<1x160xf32, #tpu.memory_space<vmem>>, vector<1x32xf32>
    %cst_27 = arith.constant dense<0.000000e+00> : vector<8x32xf32>
    %67 = tpu.matmul %54, %65, %cst_27 {dimension_numbers = #tpu.dot_dimension_numbers<[1], [0], [0], [1], [0, 0, 1, 1], [], []>} : vector<8x32xbf16>, vector<32x32xbf16>, vector<8x32xf32> -> vector<8x32xf32>
    %68 = vector.broadcast %66 : vector<1x32xf32> to vector<8x32xf32>
    %69 = arith.addf %67, %68 : vector<8x32xf32>
    %c0_28 = arith.constant 0 : index
    %c32 = arith.constant 32 : index
    %70 = vector.load %arg7[%c0_28, %c32] : memref<32x160xbf16, #tpu.memory_space<vmem>>, vector<32x32xbf16>
    %c0_29 = arith.constant 0 : index
    %c32_30 = arith.constant 32 : index
    %71 = vector.load %arg8[%c0_29, %c32_30] : memref<1x160xf32, #tpu.memory_space<vmem>>, vector<1x32xf32>
    %cst_31 = arith.constant dense<0.000000e+00> : vector<8x32xf32>
    %72 = tpu.matmul %54, %70, %cst_31 {dimension_numbers = #tpu.dot_dimension_numbers<[1], [0], [0], [1], [0, 0, 1, 1], [], []>} : vector<8x32xbf16>, vector<32x32xbf16>, vector<8x32xf32> -> vector<8x32xf32>
    %73 = vector.broadcast %71 : vector<1x32xf32> to vector<8x32xf32>
    %74 = arith.addf %72, %73 : vector<8x32xf32>
    %75 = arith.mulf %69, %61 : vector<8x32xf32>
    %76 = arith.mulf %74, %64 : vector<8x32xf32>
    %77 = arith.addf %75, %76 : vector<8x32xf32>
    %cst_32 = arith.constant 0.353553385 : f32
    %78 = vector.broadcast %cst_32 : f32 to vector<8x32xf32>
    %79 = arith.mulf %77, %78 : vector<8x32xf32>
    %80 = arith.truncf %79 : vector<8x32xf32> to vector<8x32xbf16>
    %c0_33 = arith.constant 0 : index
    %c64 = arith.constant 64 : index
    %81 = vector.load %arg7[%c0_33, %c64] : memref<32x160xbf16, #tpu.memory_space<vmem>>, vector<32x32xbf16>
    %c0_34 = arith.constant 0 : index
    %c64_35 = arith.constant 64 : index
    %82 = vector.load %arg8[%c0_34, %c64_35] : memref<1x160xf32, #tpu.memory_space<vmem>>, vector<1x32xf32>
    %cst_36 = arith.constant dense<0.000000e+00> : vector<8x32xf32>
    %83 = tpu.matmul %31, %81, %cst_36 {dimension_numbers = #tpu.dot_dimension_numbers<[1], [0], [0], [1], [0, 0, 1, 1], [], []>} : vector<8x32xbf16>, vector<32x32xbf16>, vector<8x32xf32> -> vector<8x32xf32>
    %84 = vector.broadcast %82 : vector<1x32xf32> to vector<8x32xf32>
    %85 = arith.addf %83, %84 : vector<8x32xf32>
    %c0_37 = arith.constant 0 : index
    %c96 = arith.constant 96 : index
    %86 = vector.load %arg7[%c0_37, %c96] : memref<32x160xbf16, #tpu.memory_space<vmem>>, vector<32x32xbf16>
    %c0_38 = arith.constant 0 : index
    %c96_39 = arith.constant 96 : index
    %87 = vector.load %arg8[%c0_38, %c96_39] : memref<1x160xf32, #tpu.memory_space<vmem>>, vector<1x32xf32>
    %cst_40 = arith.constant dense<0.000000e+00> : vector<8x32xf32>
    %88 = tpu.matmul %31, %86, %cst_40 {dimension_numbers = #tpu.dot_dimension_numbers<[1], [0], [0], [1], [0, 0, 1, 1], [], []>} : vector<8x32xbf16>, vector<32x32xbf16>, vector<8x32xf32> -> vector<8x32xf32>
    %89 = vector.broadcast %87 : vector<1x32xf32> to vector<8x32xf32>
    %90 = arith.addf %88, %89 : vector<8x32xf32>
    %91 = arith.mulf %85, %56 : vector<8x32xf32>
    %92 = arith.mulf %90, %58 : vector<8x32xf32>
    %93 = arith.addf %91, %92 : vector<8x32xf32>
    %94 = arith.truncf %93 : vector<8x32xf32> to vector<8x32xbf16>
    %c0_41 = arith.constant 0 : index
    %c128 = arith.constant 128 : index
    %95 = vector.load %arg7[%c0_41, %c128] : memref<32x160xbf16, #tpu.memory_space<vmem>>, vector<32x32xbf16>
    %c0_42 = arith.constant 0 : index
    %c128_43 = arith.constant 128 : index
    %96 = vector.load %arg8[%c0_42, %c128_43] : memref<1x160xf32, #tpu.memory_space<vmem>>, vector<1x32xf32>
    %cst_44 = arith.constant dense<0.000000e+00> : vector<8x32xf32>
    %97 = tpu.matmul %31, %95, %cst_44 {dimension_numbers = #tpu.dot_dimension_numbers<[1], [0], [0], [1], [0, 0, 1, 1], [], []>} : vector<8x32xbf16>, vector<32x32xbf16>, vector<8x32xf32> -> vector<8x32xf32>
    %98 = vector.broadcast %96 : vector<1x32xf32> to vector<8x32xf32>
    %99 = arith.addf %97, %98 : vector<8x32xf32>
    %100 = arith.truncf %99 : vector<8x32xf32> to vector<8x32xbf16>
    %101 = tpu.iota {dimensions = array<i32: 0>} : vector<8x8xi32>
    %102 = vector.broadcast %1 : i32 to vector<8x8xi32>
    %103 = arith.addi %102, %101 : vector<8x8xi32>
    %104 = tpu.iota {dimensions = array<i32: 1>} : vector<8x8xi32>
    %105 = arith.cmpi sle, %104, %103 : vector<8x8xi32>
    %106 = vector.extract_strided_slice %80 {offsets = [0, 0], sizes = [8, 8], strides = [1, 1]} : vector<8x32xbf16> to vector<8x8xbf16>
    %107 = vector.extract_strided_slice %94 {offsets = [0, 0], sizes = [8, 8], strides = [1, 1]} : vector<8x32xbf16> to vector<8x8xbf16>
    %108 = vector.extract_strided_slice %100 {offsets = [0, 0], sizes = [8, 8], strides = [1, 1]} : vector<8x32xbf16> to vector<8x8xbf16>
    %cst_45 = arith.constant dense<0.000000e+00> : vector<8x8xf32>
    %109 = tpu.matmul %106, %107, %cst_45 {dimension_numbers = #tpu.dot_dimension_numbers<[1], [1], [0], [0], [0, 0, 1, 0], [], []>} : vector<8x8xbf16>, vector<8x8xbf16>, vector<8x8xf32> -> vector<8x8xf32>
    %cst_46 = arith.constant 0xFF800000 : f32
    %110 = vector.broadcast %cst_46 : f32 to vector<8x8xf32>
    %111 = arith.select %105, %109, %110 : vector<8x8xi1>, vector<8x8xf32>
    %cst_47 = arith.constant dense<0xFF800000> : vector<8xf32>
    %112 = vector.multi_reduction <maximumf>, %111, %cst_47 [1] : vector<8x8xf32> to vector<8xf32>
    %113 = vector.shape_cast %112 : vector<8xf32> to vector<8x1xf32>
    %114 = vector.broadcast %113 : vector<8x1xf32> to vector<8x8xf32>
    %115 = arith.subf %111, %114 : vector<8x8xf32>
    %116 = math.exp %115 : vector<8x8xf32>
    %cst_48 = arith.constant dense<0.000000e+00> : vector<8xf32>
    %117 = vector.multi_reduction <add>, %116, %cst_48 [1] : vector<8x8xf32> to vector<8xf32>
    %118 = vector.shape_cast %117 : vector<8xf32> to vector<8x1xf32>
    %119 = tpu.reciprocal %118 {approx = true} : vector<8x1xf32> -> vector<8x1xf32>
    %120 = vector.broadcast %119 : vector<8x1xf32> to vector<8x8xf32>
    %121 = arith.mulf %116, %120 : vector<8x8xf32>
    %122 = arith.truncf %121 : vector<8x8xf32> to vector<8x8xbf16>
    %cst_49 = arith.constant dense<0.000000e+00> : vector<8x8xf32>
    %123 = tpu.matmul %122, %108, %cst_49 {dimension_numbers = #tpu.dot_dimension_numbers<[1], [0], [0], [1], [0, 0, 1, 1], [], []>} : vector<8x8xbf16>, vector<8x8xbf16>, vector<8x8xf32> -> vector<8x8xf32>
    %c0_50 = arith.constant 0 : index
    %c0_51 = arith.constant 0 : index
    %124 = vector.load %arg18[%c0_50, %c0_51] : memref<8x32xf32, #tpu.memory_space<vmem>>, vector<8x8xf32>
    tpu.vector_store %arg18[%c0_50, %c0_51], %123 {strides = array<i32>} : memref<8x32xf32, #tpu.memory_space<vmem>>, vector<8x8xf32>,
    %125 = vector.extract_strided_slice %80 {offsets = [0, 8], sizes = [8, 8], strides = [1, 1]} : vector<8x32xbf16> to vector<8x8xbf16>
    %126 = vector.extract_strided_slice %94 {offsets = [0, 8], sizes = [8, 8], strides = [1, 1]} : vector<8x32xbf16> to vector<8x8xbf16>
    %127 = vector.extract_strided_slice %100 {offsets = [0, 8], sizes = [8, 8], strides = [1, 1]} : vector<8x32xbf16> to vector<8x8xbf16>
    %cst_52 = arith.constant dense<0.000000e+00> : vector<8x8xf32>
    %128 = tpu.matmul %125, %126, %cst_52 {dimension_numbers = #tpu.dot_dimension_numbers<[1], [1], [0], [0], [0, 0, 1, 0], [], []>} : vector<8x8xbf16>, vector<8x8xbf16>, vector<8x8xf32> -> vector<8x8xf32>
    %cst_53 = arith.constant 0xFF800000 : f32
    %129 = vector.broadcast %cst_53 : f32 to vector<8x8xf32>
    %130 = arith.select %105, %128, %129 : vector<8x8xi1>, vector<8x8xf32>
    %cst_54 = arith.constant dense<0xFF800000> : vector<8xf32>
    %131 = vector.multi_reduction <maximumf>, %130, %cst_54 [1] : vector<8x8xf32> to vector<8xf32>
    %132 = vector.shape_cast %131 : vector<8xf32> to vector<8x1xf32>
    %133 = vector.broadcast %132 : vector<8x1xf32> to vector<8x8xf32>
    %134 = arith.subf %130, %133 : vector<8x8xf32>
    %135 = math.exp %134 : vector<8x8xf32>
    %cst_55 = arith.constant dense<0.000000e+00> : vector<8xf32>
    %136 = vector.multi_reduction <add>, %135, %cst_55 [1] : vector<8x8xf32> to vector<8xf32>
    %137 = vector.shape_cast %136 : vector<8xf32> to vector<8x1xf32>
    %138 = tpu.reciprocal %137 {approx = true} : vector<8x1xf32> -> vector<8x1xf32>
    %139 = vector.broadcast %138 : vector<8x1xf32> to vector<8x8xf32>
    %140 = arith.mulf %135, %139 : vector<8x8xf32>
    %141 = arith.truncf %140 : vector<8x8xf32> to vector<8x8xbf16>
    %cst_56 = arith.constant dense<0.000000e+00> : vector<8x8xf32>
    %142 = tpu.matmul %141, %127, %cst_56 {dimension_numbers = #tpu.dot_dimension_numbers<[1], [0], [0], [1], [0, 0, 1, 1], [], []>} : vector<8x8xbf16>, vector<8x8xbf16>, vector<8x8xf32> -> vector<8x8xf32>
    %c0_57 = arith.constant 0 : index
    %c8 = arith.constant 8 : index
    %143 = vector.load %arg18[%c0_57, %c8] : memref<8x32xf32, #tpu.memory_space<vmem>>, vector<8x8xf32>
    tpu.vector_store %arg18[%c0_57, %c8], %142 {strides = array<i32>} : memref<8x32xf32, #tpu.memory_space<vmem>>, vector<8x8xf32>,
    %144 = vector.extract_strided_slice %80 {offsets = [0, 16], sizes = [8, 8], strides = [1, 1]} : vector<8x32xbf16> to vector<8x8xbf16>
    %145 = vector.extract_strided_slice %94 {offsets = [0, 16], sizes = [8, 8], strides = [1, 1]} : vector<8x32xbf16> to vector<8x8xbf16>
    %146 = vector.extract_strided_slice %100 {offsets = [0, 16], sizes = [8, 8], strides = [1, 1]} : vector<8x32xbf16> to vector<8x8xbf16>
    %cst_58 = arith.constant dense<0.000000e+00> : vector<8x8xf32>
    %147 = tpu.matmul %144, %145, %cst_58 {dimension_numbers = #tpu.dot_dimension_numbers<[1], [1], [0], [0], [0, 0, 1, 0], [], []>} : vector<8x8xbf16>, vector<8x8xbf16>, vector<8x8xf32> -> vector<8x8xf32>
    %cst_59 = arith.constant 0xFF800000 : f32
    %148 = vector.broadcast %cst_59 : f32 to vector<8x8xf32>
    %149 = arith.select %105, %147, %148 : vector<8x8xi1>, vector<8x8xf32>
    %cst_60 = arith.constant dense<0xFF800000> : vector<8xf32>
    %150 = vector.multi_reduction <maximumf>, %149, %cst_60 [1] : vector<8x8xf32> to vector<8xf32>
    %151 = vector.shape_cast %150 : vector<8xf32> to vector<8x1xf32>
    %152 = vector.broadcast %151 : vector<8x1xf32> to vector<8x8xf32>
    %153 = arith.subf %149, %152 : vector<8x8xf32>
    %154 = math.exp %153 : vector<8x8xf32>
    %cst_61 = arith.constant dense<0.000000e+00> : vector<8xf32>
    %155 = vector.multi_reduction <add>, %154, %cst_61 [1] : vector<8x8xf32> to vector<8xf32>
    %156 = vector.shape_cast %155 : vector<8xf32> to vector<8x1xf32>
    %157 = tpu.reciprocal %156 {approx = true} : vector<8x1xf32> -> vector<8x1xf32>
    %158 = vector.broadcast %157 : vector<8x1xf32> to vector<8x8xf32>
    %159 = arith.mulf %154, %158 : vector<8x8xf32>
    %160 = arith.truncf %159 : vector<8x8xf32> to vector<8x8xbf16>
    %cst_62 = arith.constant dense<0.000000e+00> : vector<8x8xf32>
    %161 = tpu.matmul %160, %146, %cst_62 {dimension_numbers = #tpu.dot_dimension_numbers<[1], [0], [0], [1], [0, 0, 1, 1], [], []>} : vector<8x8xbf16>, vector<8x8xbf16>, vector<8x8xf32> -> vector<8x8xf32>
    %c0_63 = arith.constant 0 : index
    %c16 = arith.constant 16 : index
    %162 = vector.load %arg18[%c0_63, %c16] : memref<8x32xf32, #tpu.memory_space<vmem>>, vector<8x8xf32>
    tpu.vector_store %arg18[%c0_63, %c16], %161 {strides = array<i32>} : memref<8x32xf32, #tpu.memory_space<vmem>>, vector<8x8xf32>,
    %163 = vector.extract_strided_slice %80 {offsets = [0, 24], sizes = [8, 8], strides = [1, 1]} : vector<8x32xbf16> to vector<8x8xbf16>
    %164 = vector.extract_strided_slice %94 {offsets = [0, 24], sizes = [8, 8], strides = [1, 1]} : vector<8x32xbf16> to vector<8x8xbf16>
    %165 = vector.extract_strided_slice %100 {offsets = [0, 24], sizes = [8, 8], strides = [1, 1]} : vector<8x32xbf16> to vector<8x8xbf16>
    %cst_64 = arith.constant dense<0.000000e+00> : vector<8x8xf32>
    %166 = tpu.matmul %163, %164, %cst_64 {dimension_numbers = #tpu.dot_dimension_numbers<[1], [1], [0], [0], [0, 0, 1, 0], [], []>} : vector<8x8xbf16>, vector<8x8xbf16>, vector<8x8xf32> -> vector<8x8xf32>
    %cst_65 = arith.constant 0xFF800000 : f32
    %167 = vector.broadcast %cst_65 : f32 to vector<8x8xf32>
    %168 = arith.select %105, %166, %167 : vector<8x8xi1>, vector<8x8xf32>
    %cst_66 = arith.constant dense<0xFF800000> : vector<8xf32>
    %169 = vector.multi_reduction <maximumf>, %168, %cst_66 [1] : vector<8x8xf32> to vector<8xf32>
    %170 = vector.shape_cast %169 : vector<8xf32> to vector<8x1xf32>
    %171 = vector.broadcast %170 : vector<8x1xf32> to vector<8x8xf32>
    %172 = arith.subf %168, %171 : vector<8x8xf32>
    %173 = math.exp %172 : vector<8x8xf32>
    %cst_67 = arith.constant dense<0.000000e+00> : vector<8xf32>
    %174 = vector.multi_reduction <add>, %173, %cst_67 [1] : vector<8x8xf32> to vector<8xf32>
    %175 = vector.shape_cast %174 : vector<8xf32> to vector<8x1xf32>
    %176 = tpu.reciprocal %175 {approx = true} : vector<8x1xf32> -> vector<8x1xf32>
    %177 = vector.broadcast %176 : vector<8x1xf32> to vector<8x8xf32>
    %178 = arith.mulf %173, %177 : vector<8x8xf32>
    %179 = arith.truncf %178 : vector<8x8xf32> to vector<8x8xbf16>
    %cst_68 = arith.constant dense<0.000000e+00> : vector<8x8xf32>
    %180 = tpu.matmul %179, %165, %cst_68 {dimension_numbers = #tpu.dot_dimension_numbers<[1], [0], [0], [1], [0, 0, 1, 1], [], []>} : vector<8x8xbf16>, vector<8x8xbf16>, vector<8x8xf32> -> vector<8x8xf32>
    %c0_69 = arith.constant 0 : index
    %c24 = arith.constant 24 : index
    %181 = vector.load %arg18[%c0_69, %c24] : memref<8x32xf32, #tpu.memory_space<vmem>>, vector<8x8xf32>
    tpu.vector_store %arg18[%c0_69, %c24], %180 {strides = array<i32>} : memref<8x32xf32, #tpu.memory_space<vmem>>, vector<8x8xf32>,
    %c0_70 = arith.constant 0 : index
    %c0_71 = arith.constant 0 : index
    %182 = vector.load %arg18[%c0_70, %c0_71] : memref<8x32xf32, #tpu.memory_space<vmem>>, vector<8x32xf32>
    %183 = arith.truncf %182 : vector<8x32xf32> to vector<8x32xbf16>
    %c0_72 = arith.constant 0 : index
    %c0_73 = arith.constant 0 : index
    %184 = vector.load %arg9[%c0_72, %c0_73] : memref<32x32xbf16, #tpu.memory_space<vmem>>, vector<32x32xbf16>
    %cst_74 = arith.constant dense<0.000000e+00> : vector<8x32xf32>
    %185 = tpu.matmul %183, %184, %cst_74 {dimension_numbers = #tpu.dot_dimension_numbers<[1], [0], [0], [1], [0, 0, 1, 1], [], []>} : vector<8x32xbf16>, vector<32x32xbf16>, vector<8x32xf32> -> vector<8x32xf32>
    %c0_75 = arith.constant 0 : index
    %c0_76 = arith.constant 0 : index
    %186 = vector.load %arg10[%c0_75, %c0_76] : memref<1x32xf32, #tpu.memory_space<vmem>>, vector<1x32xf32>
    %187 = vector.broadcast %186 : vector<1x32xf32> to vector<8x32xf32>
    %188 = arith.addf %185, %187 : vector<8x32xf32>
    %189 = arith.addf %8, %188 : vector<8x32xf32>
    %c0_77 = arith.constant 0 : index
    %c0_78 = arith.constant 0 : index
    %190 = vector.load %arg5[%c0_77, %c0_78] : memref<1x32xf32, #tpu.memory_space<vmem>>, vector<1x32xf32>
    %c0_79 = arith.constant 0 : index
    %c0_80 = arith.constant 0 : index
    %191 = vector.load %arg6[%c0_79, %c0_80] : memref<1x32xf32, #tpu.memory_space<vmem>>, vector<1x32xf32>
    %cst_81 = arith.constant dense<0.000000e+00> : vector<8xf32>
    %192 = vector.multi_reduction <add>, %189, %cst_81 [1] : vector<8x32xf32> to vector<8xf32>
    %193 = vector.shape_cast %192 : vector<8xf32> to vector<8x1xf32>
    %cst_82 = arith.constant 3.200000e+01 : f32
    %194 = vector.broadcast %cst_82 : f32 to vector<8x1xf32>
    %195 = arith.divf %193, %194 : vector<8x1xf32>
    %196 = vector.broadcast %195 : vector<8x1xf32> to vector<8x32xf32>
    %197 = arith.subf %189, %196 : vector<8x32xf32>
    %198 = arith.mulf %197, %197 : vector<8x32xf32>
    %cst_83 = arith.constant dense<0.000000e+00> : vector<8xf32>
    %199 = vector.multi_reduction <add>, %198, %cst_83 [1] : vector<8x32xf32> to vector<8xf32>
    %200 = vector.shape_cast %199 : vector<8xf32> to vector<8x1xf32>
    %cst_84 = arith.constant 3.200000e+01 : f32
    %201 = vector.broadcast %cst_84 : f32 to vector<8x1xf32>
    %202 = arith.divf %200, %201 : vector<8x1xf32>
    %203 = vector.broadcast %195 : vector<8x1xf32> to vector<8x32xf32>
    %204 = arith.subf %189, %203 : vector<8x32xf32>
    %cst_85 = arith.constant 9.99999974E-6 : f32
    %205 = vector.broadcast %cst_85 : f32 to vector<8x1xf32>
    %206 = arith.addf %202, %205 : vector<8x1xf32>
    %207 = math.rsqrt %206 : vector<8x1xf32>
    %208 = vector.broadcast %207 : vector<8x1xf32> to vector<8x32xf32>
    %209 = arith.mulf %204, %208 : vector<8x32xf32>
    %210 = vector.broadcast %190 : vector<1x32xf32> to vector<8x32xf32>
    %211 = arith.mulf %209, %210 : vector<8x32xf32>
    %212 = vector.broadcast %191 : vector<1x32xf32> to vector<8x32xf32>
    %213 = arith.addf %211, %212 : vector<8x32xf32>
    %214 = arith.truncf %213 : vector<8x32xf32> to vector<8x32xbf16>
    %c0_86 = arith.constant 0 : index
    %c0_87 = arith.constant 0 : index
    %215 = vector.load %arg11[%c0_86, %c0_87] : memref<32x64xbf16, #tpu.memory_space<vmem>>, vector<32x64xbf16>
    %cst_88 = arith.constant dense<0.000000e+00> : vector<8x64xf32>
    %216 = tpu.matmul %214, %215, %cst_88 {dimension_numbers = #tpu.dot_dimension_numbers<[1], [0], [0], [1], [0, 0, 1, 1], [], []>} : vector<8x32xbf16>, vector<32x64xbf16>, vector<8x64xf32> -> vector<8x64xf32>
    %c0_89 = arith.constant 0 : index
    %c0_90 = arith.constant 0 : index
    %217 = vector.load %arg12[%c0_89, %c0_90] : memref<1x64xf32, #tpu.memory_space<vmem>>, vector<1x64xf32>
    %218 = vector.broadcast %217 : vector<1x64xf32> to vector<8x64xf32>
    %219 = arith.addf %216, %218 : vector<8x64xf32>
    %cst_91 = arith.constant 5.000000e-01 : f32
    %220 = vector.broadcast %cst_91 : f32 to vector<8x64xf32>
    %221 = arith.mulf %220, %219 : vector<8x64xf32>
    %cst_92 = arith.constant 0.707106769 : f32
    %222 = vector.broadcast %cst_92 : f32 to vector<8x64xf32>
    %223 = arith.mulf %219, %222 : vector<8x64xf32>
    %224 = math.erf %223 : vector<8x64xf32>
    %cst_93 = arith.constant 1.000000e+00 : f32
    %225 = vector.broadcast %cst_93 : f32 to vector<8x64xf32>
    %226 = arith.addf %225, %224 : vector<8x64xf32>
    %227 = arith.mulf %221, %226 : vector<8x64xf32>
    %228 = arith.truncf %227 : vector<8x64xf32> to vector<8x64xbf16>
    %c0_94 = arith.constant 0 : index
    %c0_95 = arith.constant 0 : index
    %229 = vector.load %arg13[%c0_94, %c0_95] : memref<64x32xbf16, #tpu.memory_space<vmem>>, vector<64x32xbf16>
    %cst_96 = arith.constant dense<0.000000e+00> : vector<8x32xf32>
    %230 = tpu.matmul %228, %229, %cst_96 {dimension_numbers = #tpu.dot_dimension_numbers<[1], [0], [0], [1], [0, 0, 1, 1], [], []>} : vector<8x64xbf16>, vector<64x32xbf16>, vector<8x32xf32> -> vector<8x32xf32>
    %c0_97 = arith.constant 0 : index
    %c0_98 = arith.constant 0 : index
    %231 = vector.load %arg14[%c0_97, %c0_98] : memref<1x32xf32, #tpu.memory_space<vmem>>, vector<1x32xf32>
    %232 = vector.broadcast %231 : vector<1x32xf32> to vector<8x32xf32>
    %233 = arith.addf %230, %232 : vector<8x32xf32>
    %234 = arith.addf %189, %233 : vector<8x32xf32>
    %c0_99 = arith.constant 0 : index
    %c0_100 = arith.constant 0 : index
    %c0_101 = arith.constant 0 : index
    %235 = vector.load %arg17[%c0_99, %c0_100, %c0_101] : memref<1x8x32xf32, #tpu.memory_space<vmem>>, vector<1x8x32xf32>
    %236 = vector.shape_cast %235 : vector<1x8x32xf32> to vector<8x32xf32>
    %237 = vector.shape_cast %234 : vector<8x32xf32> to vector<1x8x32xf32>
    tpu.vector_store %arg17[%c0_99, %c0_100, %c0_101], %237 {strides = array<i32>} : memref<1x8x32xf32, #tpu.memory_space<vmem>>, vector<1x8x32xf32>,
    return
  }
  func.func @transform_0(%arg0: i32, %arg1: i32) -> (i32, i32, i32) {
    %c0_i32 = arith.constant 0 : i32
    %c0_i32_0 = arith.constant 0 : i32
    %c0_i32_1 = arith.constant 0 : i32
    return %arg0, %c0_i32, %c0_i32_0 : i32, i32, i32
  }
  func.func @transform_1(%arg0: i32, %arg1: i32) -> (i32, i32) {
    %c0_i32 = arith.constant 0 : i32
    %c0_i32_0 = arith.constant 0 : i32
    %c0_i32_1 = arith.constant 0 : i32
    return %c0_i32, %c0_i32_0 : i32, i32
  }
  func.func @transform_2(%arg0: i32, %arg1: i32) -> (i32, i32) {
    %c0_i32 = arith.constant 0 : i32
    %c0_i32_0 = arith.constant 0 : i32
    %c0_i32_1 = arith.constant 0 : i32
    return %c0_i32, %c0_i32_0 : i32, i32
  }
  func.func @transform_3(%arg0: i32, %arg1: i32) -> (i32, i32) {
    %c0_i32 = arith.constant 0 : i32
    %c0_i32_0 = arith.constant 0 : i32
    %c0_i32_1 = arith.constant 0 : i32
    return %c0_i32, %c0_i32_0 : i32, i32
  }
  func.func @transform_4(%arg0: i32, %arg1: i32) -> (i32, i32) {
    %c0_i32 = arith.constant 0 : i32
    %c0_i32_0 = arith.constant 0 : i32
    %c0_i32_1 = arith.constant 0 : i32
    return %c0_i32, %c0_i32_0 : i32, i32
  }
  func.func @transform_5(%arg0: i32, %arg1: i32) -> (i32, i32) {
    %c0_i32 = arith.constant 0 : i32
    %c0_i32_0 = arith.constant 0 : i32
    %c0_i32_1 = arith.constant 0 : i32
    return %c0_i32, %c0_i32_0 : i32, i32
  }
  func.func @transform_6(%arg0: i32, %arg1: i32) -> (i32, i32) {
    %c0_i32 = arith.constant 0 : i32
    %c0_i32_0 = arith.constant 0 : i32
    %c0_i32_1 = arith.constant 0 : i32
    return %c0_i32, %c0_i32_0 : i32, i32
  }
  func.func @transform_7(%arg0: i32, %arg1: i32) -> (i32, i32) {
    %c0_i32 = arith.constant 0 : i32
    %c0_i32_0 = arith.constant 0 : i32
    %c0_i32_1 = arith.constant 0 : i32
    return %c0_i32, %c0_i32_0 : i32, i32
  }
  func.func @transform_8(%arg0: i32, %arg1: i32) -> (i32, i32) {
    %c0_i32 = arith.constant 0 : i32
    %c0_i32_0 = arith.constant 0 : i32
    %c0_i32_1 = arith.constant 0 : i32
    return %c0_i32, %c0_i32_0 : i32, i32
  }
  func.func @transform_9(%arg0: i32, %arg1: i32) -> (i32, i32) {
    %c0_i32 = arith.constant 0 : i32
    %c0_i32_0 = arith.constant 0 : i32
    %c0_i32_1 = arith.constant 0 : i32
    return %c0_i32, %c0_i32_0 : i32, i32
  }
  func.func @transform_10(%arg0: i32, %arg1: i32) -> (i32, i32) {
    %c0_i32 = arith.constant 0 : i32
    %c0_i32_0 = arith.constant 0 : i32
    %c0_i32_1 = arith.constant 0 : i32
    return %c0_i32, %c0_i32_0 : i32, i32
  }
  func.func @transform_11(%arg0: i32, %arg1: i32) -> (i32, i32) {
    %c0_i32 = arith.constant 0 : i32
    %c0_i32_0 = arith.constant 0 : i32
    %c0_i32_1 = arith.constant 0 : i32
    return %c0_i32, %c0_i32_0 : i32, i32
  }
  func.func @transform_12(%arg0: i32, %arg1: i32) -> (i32, i32) {
    %c0_i32 = arith.constant 0 : i32
    %c0_i32_0 = arith.constant 0 : i32
    %c0_i32_1 = arith.constant 0 : i32
    return %c0_i32, %c0_i32_0 : i32, i32
  }
  func.func @transform_13(%arg0: i32, %arg1: i32) -> (i32, i32) {
    %c0_i32 = arith.constant 0 : i32
    %c0_i32_0 = arith.constant 0 : i32
    %c0_i32_1 = arith.constant 0 : i32
    return %c0_i32, %c0_i32_0 : i32, i32
  }
  func.func @transform_14(%arg0: i32, %arg1: i32) -> (i32, i32) {
    %c0_i32 = arith.constant 0 : i32
    %c0_i32_0 = arith.constant 0 : i32
    %c0_i32_1 = arith.constant 0 : i32
    return %c0_i32, %c0_i32_0 : i32, i32
  }
  func.func @transform_15(%arg0: i32, %arg1: i32) -> (i32, i32, i32) {
    %c0_i32 = arith.constant 0 : i32
    %c0_i32_0 = arith.constant 0 : i32
    return %arg0, %arg1, %c0_i32 : i32, i32, i32
  }
}

</mosaic_0001>

<llo_original>
// kernel: tpu_custom_call.1
$region0: #{tpu_custom_call.1}
  #allocation0 [shape = 'u32[]', space=smem, size = 0x4, offset = 0x4, fixed_abs, tag = 'smem constant byte address 0x4 - core index']
  #allocation1 [shape = 'u32[144,128]{1,0:T(1,128)}', space=vmem, size = 0x12000, scoped, tag = 'internal scratch']
  #allocation2 [shape = 'f32[8,32]{1,0:T(8,128)}', space=vmem, size = 0x1000, scoped, tag = 'scratch operand']
  %s0 = inlined_call_operand.vmem [shape: f32[2,8,32], index: 0, kind: input, shape index: {}]
  %s1 = inlined_call_operand.hbm [shape: f32[1,32], index: 1, kind: input, shape index: {}]
  %s2 = inlined_call_operand.hbm [shape: f32[1,32], index: 2, kind: input, shape index: {}]
  %s3 = inlined_call_operand.hbm [shape: f32[1,32], index: 3, kind: input, shape index: {}]
  %s4 = inlined_call_operand.hbm [shape: f32[1,32], index: 4, kind: input, shape index: {}]
  %s5 = inlined_call_operand.vmem [shape: bf16[32,160], index: 5, kind: input, shape index: {}]
  %s6 = inlined_call_operand.hbm [shape: f32[1,160], index: 6, kind: input, shape index: {}]
  %s7 = inlined_call_operand.hbm [shape: bf16[32,32], index: 7, kind: input, shape index: {}]
  %s8 = inlined_call_operand.hbm [shape: f32[1,32], index: 8, kind: input, shape index: {}]
  %s9 = inlined_call_operand.vmem [shape: bf16[32,64], index: 9, kind: input, shape index: {}]
  %s10 = inlined_call_operand.vmem [shape: f32[1,64], index: 10, kind: input, shape index: {}]
  %s11 = inlined_call_operand.vmem [shape: bf16[64,32], index: 11, kind: input, shape index: {}]
  %s12 = inlined_call_operand.hbm [shape: f32[1,32], index: 12, kind: input, shape index: {}]
  %s13 = inlined_call_operand.hbm [shape: f32[8,8], index: 13, kind: input, shape index: {}]
  %s14 = inlined_call_operand.vmem [shape: f32[8,8], index: 14, kind: input, shape index: {}]
  %s15 = inlined_call_operand.hbm [shape: f32[2,8,32], index: 15, kind: output, shape index: {}]
  %s16 = sld [smem:[#allocation0]]
  $region129: #{tpu_custom_call.1} parent=0
    _
  %s18 = ssub.s32 1, %s16
  %s19 = scalar_select 0, %s18, %s16
  $region1: #{tpu_custom_call.1} parent=0
    #allocation3 [shape = 'u8[512]{0}', space=vmem, size = 0x400, scoped, tag = 'input window, operand 1, single buffered']
    #allocation4 [shape = 's32[2]{0}', space=sflag, size = 0x8, scoped, tag = 'scoped memory for tpu_custom_call.1']
    #allocation5 [shape = 's32[2]{0}', space=sflag, size = 0x8, scoped, tag = 'scoped memory for tpu_custom_call.1']
    #allocation6 [shape = 'u8[512]{0}', space=vmem, size = 0x400, scoped, tag = 'input window, operand 2, single buffered']
    #allocation7 [shape = 's32[1]{0}', space=sflag, size = 0x4, scoped, tag = 'scoped memory for tpu_custom_call.1']
    #allocation8 [shape = 'u8[512]{0}', space=vmem, size = 0x400, scoped, tag = 'input window, operand 3, single buffered']
    #allocation9 [shape = 'u8[512]{0}', space=vmem, size = 0x400, scoped, tag = 'input window, operand 4, single buffered']
    #allocation10 [shape = 's32[1]{0}', space=sflag, size = 0x4, scoped, tag = 'scoped memory for tpu_custom_call.1']
    #allocation11 [shape = 'u8[1024]{0}', space=vmem, size = 0x400, scoped, tag = 'input window, operand 6, single buffered']
    #allocation12 [shape = 'u8[8192]{0}', space=vmem, size = 0x2000, scoped, tag = 'input window, operand 7, single buffered']
    #allocation13 [shape = 's32[1]{0}', space=sflag, size = 0x4, scoped, tag = 'scoped memory for tpu_custom_call.1']
    #allocation14 [shape = 'u8[512]{0}', space=vmem, size = 0x400, scoped, tag = 'input window, operand 8, single buffered']
    #allocation15 [shape = 'u8[512]{0}', space=vmem, size = 0x400, scoped, tag = 'input window, operand 12, single buffered']
    #allocation16 [shape = 's32[1]{0}', space=sflag, size = 0x4, scoped, tag = 'scoped memory for tpu_custom_call.1']
    #allocation17 [shape = 'u8[4096]{0}', space=vmem, size = 0x1000, scoped, tag = 'input window, operand 13, single buffered']
    #allocation18 [shape = 'u8[8192]{0}', space=vmem, size = 0x2000, scoped, tag = 'output window, operand 0']
    %20 = vsyncpa [#allocation4], 0
    %21 = vsyncpa [#allocation7], 0
    %22 = vsyncpa [#allocation10], 0
    %23 = vsyncpa [#allocation13], 0
    %24 = vsyncpa [#allocation16], 0
    %25 = vsyncpa [#allocation5], 0
    %s26 = scalar_lea.sflag [#allocation5], 1
    %27 = vsyncpa %s26, 0
    loop: start=0, step=1, limit=4
    $region2: #{tpu_custom_call.1} parent=1 // loop_pre_header
      _
    $region3: #{tpu_custom_call.1} parent=1 // loop_header
      %s29 = sphi 0, %s33
      %p30 = scmp.ge.s32.totalorder %s29, 4
      %s36 = sphi 0, %s48
      %s37 = sphi 0, %s44
      %s38 = sphi 0, %s36
      %s39 = sphi 0, %s37
      %s40 = sphi 0, %s38
      %s41 = sphi 0, %s39
      %s51 = sphi 0, %s53
      %s54 = sphi 0, %s51
      %s55 = sphi 0, %s54
      %s71 = sphi 0, %s55
      %s75 = sphi 0, %s75
      %s77 = sphi 0, %s75
      %s78 = sphi 0, %s77
      %s92 = sphi 0, %s78
      %s96 = sphi 0, %s96
      %s98 = sphi 0, %s96
      %s99 = sphi 0, %s98
      %s113 = sphi 0, %s99
      %s117 = sphi 0, %s117
      %s119 = sphi 0, %s117
      %s120 = sphi 0, %s119
      %s134 = sphi 0, %s120
      %s138 = sphi 0, %s138
      %s140 = sphi 0, %s138
      %s141 = sphi 0, %s140
      %s155 = sphi 0, %s141
      %s159 = sphi 0, %s159
      %s161 = sphi 0, %s159
      %s162 = sphi 0, %s161
      %s176 = sphi 0, %s162
      %s180 = sphi 0, %s180
      %s182 = sphi 0, %s180
      %s183 = sphi 0, %s182
      %s197 = sphi 0, %s183
      %s201 = sphi 0, %s201
      %s203 = sphi 0, %s201
      %s204 = sphi 0, %s203
      %s218 = sphi 0, %s204
      %s222 = sphi 0, %s222
      %s224 = sphi 0, %s222
      %s225 = sphi 0, %s224
      %s239 = sphi 0, %s225
      %s243 = sphi 0, %s243
      %s245 = sphi 0, %s243
      %s246 = sphi 0, %s245
      %s260 = sphi 0, %s246
      %s264 = sphi 0, %s264
      %s266 = sphi 0, %s264
      %s267 = sphi 0, %s266
      %s281 = sphi 0, %s267
      %s285 = sphi 0, %s285
      %s287 = sphi 0, %s285
      %s288 = sphi 0, %s287
      %s302 = sphi 0, %s288
      %s306 = sphi 0, %s306
      %s308 = sphi 0, %s306
      %s309 = sphi 0, %s308
      %s323 = sphi 0, %s309
      %s327 = sphi 0, %s327
      %s329 = sphi 0, %s327
      %s330 = sphi 0, %s329
      %s344 = sphi 0, %s330
      %s348 = sphi 0, %s348
      %s350 = sphi 0, %s348
      %s351 = sphi 0, %s350
      %s365 = sphi 0, %s351
      %s373 = sphi 0, %s375
      %s376 = sphi 0, %s373
      %s377 = sphi 0, %s376
      %s393 = sphi 0, %s377
    $region4: #{tpu_custom_call.1} parent=1 // loop_header_branch
      %32 = sbr.rel (%p30) target = $region8
    $region5: #{tpu_custom_call.1} parent=1 // loop_body
      %s34 = ssub.s32 %s29, 1
      %s35 = ssub.s32 %s29, 2
      %s42 = sadd.s32 1, %s37
      %p43 = scmp.ge.s32.totalorder %s42, 1
      %s44 = scalar_select %p43, 0, %s42
      %s45 = sadd.s32 1, %s36
      %s46 = scalar_select %p43, %s45, %s36
      %p47 = scmp.ge.s32.totalorder %s46, 2
      %s48 = scalar_select %p47, 0, %s46
      %s49 = ssub.s32 %s36, %s48
      %p50 = scmp.eq.s32.totalorder %s49, 0
      %s52 = sadd.s32 %s51, 1
      %s53 = scalar_select %p50, %s51, %s52
      %p56 = pneg %p50
      %p57 = scmp.eq.s32.totalorder %s29, 1
      %p58 = por %p56, %p57
      %p59 = scmp.ne.s32.totalorder %s51, %s54
      %p60 = scmp.eq.s32.totalorder %s29, 0
      %p61 = por %p59, %p60
      %p62 = scmp.ne.s32.totalorder %s51, %s54
      %p63 = scmp.eq.s32.totalorder %s34, 1
      %p64 = por %p62, %p63
      %p65 = scmp.ne.s32.totalorder %s54, %s55
      %p66 = scmp.eq.s32.totalorder %s34, 0
      %p67 = por %p65, %p66
      %p68 = scmp.ne.s32.totalorder %s54, %s55
      %p69 = scmp.eq.s32.totalorder %s35, 1
      %p70 = por %p68, %p69
      %p72 = scmp.ne.s32.totalorder %s55, %s71
      %p73 = scmp.eq.s32.totalorder %s35, 0
      %p74 = por %p72, %p73
      %s76 = sadd.s32 %s75, 1
      %p79 = scmp.eq.s32.totalorder %s29, 1
      %p80 = scmp.ne.s32.totalorder %s75, %s77
      %p81 = scmp.eq.s32.totalorder %s29, 0
      %p82 = por %p80, %p81
      %p83 = scmp.ne.s32.totalorder %s75, %s77
      %p84 = scmp.eq.s32.totalorder %s34, 1
      %p85 = por %p83, %p84
      %p86 = scmp.ne.s32.totalorder %s77, %s78
      %p87 = scmp.eq.s32.totalorder %s34, 0
      %p88 = por %p86, %p87
      %p89 = scmp.ne.s32.totalorder %s77, %s78
      %p90 = scmp.eq.s32.totalorder %s35, 1
      %p91 = por %p89, %p90
      %p93 = scmp.ne.s32.totalorder %s78, %s92
      %p94 = scmp.eq.s32.totalorder %s35, 0
      %p95 = por %p93, %p94
      %s97 = sadd.s32 %s96, 1
      %p100 = scmp.eq.s32.totalorder %s29, 1
      %p101 = scmp.ne.s32.totalorder %s96, %s98
      %p102 = scmp.eq.s32.totalorder %s29, 0
      %p103 = por %p101, %p102
      %p104 = scmp.ne.s32.totalorder %s96, %s98
      %p105 = scmp.eq.s32.totalorder %s34, 1
      %p106 = por %p104, %p105
      %p107 = scmp.ne.s32.totalorder %s98, %s99
      %p108 = scmp.eq.s32.totalorder %s34, 0
      %p109 = por %p107, %p108
      %p110 = scmp.ne.s32.totalorder %s98, %s99
      %p111 = scmp.eq.s32.totalorder %s35, 1
      %p112 = por %p110, %p111
      %p114 = scmp.ne.s32.totalorder %s99, %s113
      %p115 = scmp.eq.s32.totalorder %s35, 0
      %p116 = por %p114, %p115
      %s118 = sadd.s32 %s117, 1
      %p121 = scmp.eq.s32.totalorder %s29, 1
      %p122 = scmp.ne.s32.totalorder %s117, %s119
      %p123 = scmp.eq.s32.totalorder %s29, 0
      %p124 = por %p122, %p123
      %p125 = scmp.ne.s32.totalorder %s117, %s119
      %p126 = scmp.eq.s32.totalorder %s34, 1
      %p127 = por %p125, %p126
      %p128 = scmp.ne.s32.totalorder %s119, %s120
      %p129 = scmp.eq.s32.totalorder %s34, 0
      %p130 = por %p128, %p129
      %p131 = scmp.ne.s32.totalorder %s119, %s120
      %p132 = scmp.eq.s32.totalorder %s35, 1
      %p133 = por %p131, %p132
      %p135 = scmp.ne.s32.totalorder %s120, %s134
      %p136 = scmp.eq.s32.totalorder %s35, 0
      %p137 = por %p135, %p136
      %s139 = sadd.s32 %s138, 1
      %p142 = scmp.eq.s32.totalorder %s29, 1
      %p143 = scmp.ne.s32.totalorder %s138, %s140
      %p144 = scmp.eq.s32.totalorder %s29, 0
      %p145 = por %p143, %p144
      %p146 = scmp.ne.s32.totalorder %s138, %s140
      %p147 = scmp.eq.s32.totalorder %s34, 1
      %p148 = por %p146, %p147
      %p149 = scmp.ne.s32.totalorder %s140, %s141
      %p150 = scmp.eq.s32.totalorder %s34, 0
      %p151 = por %p149, %p150
      %p152 = scmp.ne.s32.totalorder %s140, %s141
      %p153 = scmp.eq.s32.totalorder %s35, 1
      %p154 = por %p152, %p153
      %p156 = scmp.ne.s32.totalorder %s141, %s155
      %p157 = scmp.eq.s32.totalorder %s35, 0
      %p158 = por %p156, %p157
      %s160 = sadd.s32 %s159, 1
      %p163 = scmp.eq.s32.totalorder %s29, 1
      %p164 = scmp.ne.s32.totalorder %s159, %s161
      %p165 = scmp.eq.s32.totalorder %s29, 0
      %p166 = por %p164, %p165
      %p167 = scmp.ne.s32.totalorder %s159, %s161
      %p168 = scmp.eq.s32.totalorder %s34, 1
      %p169 = por %p167, %p168
      %p170 = scmp.ne.s32.totalorder %s161, %s162
      %p171 = scmp.eq.s32.totalorder %s34, 0
      %p172 = por %p170, %p171
      %p173 = scmp.ne.s32.totalorder %s161, %s162
      %p174 = scmp.eq.s32.totalorder %s35, 1
      %p175 = por %p173, %p174
      %p177 = scmp.ne.s32.totalorder %s162, %s176
      %p178 = scmp.eq.s32.totalorder %s35, 0
      %p179 = por %p177, %p178
      %s181 = sadd.s32 %s180, 1
      %p184 = scmp.eq.s32.totalorder %s29, 1
      %p185 = scmp.ne.s32.totalorder %s180, %s182
      %p186 = scmp.eq.s32.totalorder %s29, 0
      %p187 = por %p185, %p186
      %p188 = scmp.ne.s32.totalorder %s180, %s182
      %p189 = scmp.eq.s32.totalorder %s34, 1
      %p190 = por %p188, %p189
      %p191 = scmp.ne.s32.totalorder %s182, %s183
      %p192 = scmp.eq.s32.totalorder %s34, 0
      %p193 = por %p191, %p192
      %p194 = scmp.ne.s32.totalorder %s182, %s183
      %p195 = scmp.eq.s32.totalorder %s35, 1
      %p196 = por %p194, %p195
      %p198 = scmp.ne.s32.totalorder %s183, %s197
      %p199 = scmp.eq.s32.totalorder %s35, 0
      %p200 = por %p198, %p199
      %s202 = sadd.s32 %s201, 1
      %p205 = scmp.eq.s32.totalorder %s29, 1
      %p206 = scmp.ne.s32.totalorder %s201, %s203
      %p207 = scmp.eq.s32.totalorder %s29, 0
      %p208 = por %p206, %p207
      %p209 = scmp.ne.s32.totalorder %s201, %s203
      %p210 = scmp.eq.s32.totalorder %s34, 1
      %p211 = por %p209, %p210
      %p212 = scmp.ne.s32.totalorder %s203, %s204
      %p213 = scmp.eq.s32.totalorder %s34, 0
      %p214 = por %p212, %p213
      %p215 = scmp.ne.s32.totalorder %s203, %s204
      %p216 = scmp.eq.s32.totalorder %s35, 1
      %p217 = por %p215, %p216
      %p219 = scmp.ne.s32.totalorder %s204, %s218
      %p220 = scmp.eq.s32.totalorder %s35, 0
      %p221 = por %p219, %p220
      %s223 = sadd.s32 %s222, 1
      %p226 = scmp.eq.s32.totalorder %s29, 1
      %p227 = scmp.ne.s32.totalorder %s222, %s224
      %p228 = scmp.eq.s32.totalorder %s29, 0
      %p229 = por %p227, %p228
      %p230 = scmp.ne.s32.totalorder %s222, %s224
      %p231 = scmp.eq.s32.totalorder %s34, 1
      %p232 = por %p230, %p231
      %p233 = scmp.ne.s32.totalorder %s224, %s225
      %p234 = scmp.eq.s32.totalorder %s34, 0
      %p235 = por %p233, %p234
      %p236 = scmp.ne.s32.totalorder %s224, %s225
      %p237 = scmp.eq.s32.totalorder %s35, 1
      %p238 = por %p236, %p237
      %p240 = scmp.ne.s32.totalorder %s225, %s239
      %p241 = scmp.eq.s32.totalorder %s35, 0
      %p242 = por %p240, %p241
      %s244 = sadd.s32 %s243, 1
      %p247 = scmp.eq.s32.totalorder %s29, 1
      %p248 = scmp.ne.s32.totalorder %s243, %s245
      %p249 = scmp.eq.s32.totalorder %s29, 0
      %p250 = por %p248, %p249
      %p251 = scmp.ne.s32.totalorder %s243, %s245
      %p252 = scmp.eq.s32.totalorder %s34, 1
      %p253 = por %p251, %p252
      %p254 = scmp.ne.s32.totalorder %s245, %s246
      %p255 = scmp.eq.s32.totalorder %s34, 0
      %p256 = por %p254, %p255
      %p257 = scmp.ne.s32.totalorder %s245, %s246
      %p258 = scmp.eq.s32.totalorder %s35, 1
      %p259 = por %p257, %p258
      %p261 = scmp.ne.s32.totalorder %s246, %s260
      %p262 = scmp.eq.s32.totalorder %s35, 0
      %p263 = por %p261, %p262
      %s265 = sadd.s32 %s264, 1
      %p268 = scmp.eq.s32.totalorder %s29, 1
      %p269 = scmp.ne.s32.totalorder %s264, %s266
      %p270 = scmp.eq.s32.totalorder %s29, 0
      %p271 = por %p269, %p270
      %p272 = scmp.ne.s32.totalorder %s264, %s266
      %p273 = scmp.eq.s32.totalorder %s34, 1
      %p274 = por %p272, %p273
      %p275 = scmp.ne.s32.totalorder %s266, %s267
      %p276 = scmp.eq.s32.totalorder %s34, 0
      %p277 = por %p275, %p276
      %p278 = scmp.ne.s32.totalorder %s266, %s267
      %p279 = scmp.eq.s32.totalorder %s35, 1
      %p280 = por %p278, %p279
      %p282 = scmp.ne.s32.totalorder %s267, %s281
      %p283 = scmp.eq.s32.totalorder %s35, 0
      %p284 = por %p282, %p283
      %s286 = sadd.s32 %s285, 1
      %p289 = scmp.eq.s32.totalorder %s29, 1
      %p290 = scmp.ne.s32.totalorder %s285, %s287
      %p291 = scmp.eq.s32.totalorder %s29, 0
      %p292 = por %p290, %p291
      %p293 = scmp.ne.s32.totalorder %s285, %s287
      %p294 = scmp.eq.s32.totalorder %s34, 1
      %p295 = por %p293, %p294
      %p296 = scmp.ne.s32.totalorder %s287, %s288
      %p297 = scmp.eq.s32.totalorder %s34, 0
      %p298 = por %p296, %p297
      %p299 = scmp.ne.s32.totalorder %s287, %s288
      %p300 = scmp.eq.s32.totalorder %s35, 1
      %p301 = por %p299, %p300
      %p303 = scmp.ne.s32.totalorder %s288, %s302
      %p304 = scmp.eq.s32.totalorder %s35, 0
      %p305 = por %p303, %p304
      %s307 = sadd.s32 %s306, 1
      %p310 = scmp.eq.s32.totalorder %s29, 1
      %p311 = scmp.ne.s32.totalorder %s306, %s308
      %p312 = scmp.eq.s32.totalorder %s29, 0
      %p313 = por %p311, %p312
      %p314 = scmp.ne.s32.totalorder %s306, %s308
      %p315 = scmp.eq.s32.totalorder %s34, 1
      %p316 = por %p314, %p315
      %p317 = scmp.ne.s32.totalorder %s308, %s309
      %p318 = scmp.eq.s32.totalorder %s34, 0
      %p319 = por %p317, %p318
      %p320 = scmp.ne.s32.totalorder %s308, %s309
      %p321 = scmp.eq.s32.totalorder %s35, 1
      %p322 = por %p320, %p321
      %p324 = scmp.ne.s32.totalorder %s309, %s323
      %p325 = scmp.eq.s32.totalorder %s35, 0
      %p326 = por %p324, %p325
      %s328 = sadd.s32 %s327, 1
      %p331 = scmp.eq.s32.totalorder %s29, 1
      %p332 = scmp.ne.s32.totalorder %s327, %s329
      %p333 = scmp.eq.s32.totalorder %s29, 0
      %p334 = por %p332, %p333
      %p335 = scmp.ne.s32.totalorder %s327, %s329
      %p336 = scmp.eq.s32.totalorder %s34, 1
      %p337 = por %p335, %p336
      %p338 = scmp.ne.s32.totalorder %s329, %s330
      %p339 = scmp.eq.s32.totalorder %s34, 0
      %p340 = por %p338, %p339
      %p341 = scmp.ne.s32.totalorder %s329, %s330
      %p342 = scmp.eq.s32.totalorder %s35, 1
      %p343 = por %p341, %p342
      %p345 = scmp.ne.s32.totalorder %s330, %s344
      %p346 = scmp.eq.s32.totalorder %s35, 0
      %p347 = por %p345, %p346
      %s349 = sadd.s32 %s348, 1
      %p352 = scmp.eq.s32.totalorder %s29, 1
      %p353 = scmp.ne.s32.totalorder %s348, %s350
      %p354 = scmp.eq.s32.totalorder %s29, 0
      %p355 = por %p353, %p354
      %p356 = scmp.ne.s32.totalorder %s348, %s350
      %p357 = scmp.eq.s32.totalorder %s34, 1
      %p358 = por %p356, %p357
      %p359 = scmp.ne.s32.totalorder %s350, %s351
      %p360 = scmp.eq.s32.totalorder %s34, 0
      %p361 = por %p359, %p360
      %p362 = scmp.ne.s32.totalorder %s350, %s351
      %p363 = scmp.eq.s32.totalorder %s35, 1
      %p364 = por %p362, %p363
      %p366 = scmp.ne.s32.totalorder %s351, %s365
      %p367 = scmp.eq.s32.totalorder %s35, 0
      %p368 = por %p366, %p367
      %s369 = ssub.s32 %s36, %s48
      %s370 = ssub.s32 %s37, %s44
      %s371 = sor.u32 %s369, %s370
      %p372 = scmp.eq.s32.totalorder %s371, 0
      %s374 = sadd.s32 %s373, 1
      %s375 = scalar_select %p372, %s373, %s374
      %p378 = pneg %p372
      %p379 = scmp.eq.s32.totalorder %s29, 1
      %p380 = por %p378, %p379
      %p381 = scmp.ne.s32.totalorder %s373, %s376
      %p382 = scmp.eq.s32.totalorder %s29, 0
      %p383 = por %p381, %p382
      %p384 = scmp.ne.s32.totalorder %s373, %s376
      %p385 = scmp.eq.s32.totalorder %s34, 1
      %p386 = por %p384, %p385
      %p387 = scmp.ne.s32.totalorder %s376, %s377
      %p388 = scmp.eq.s32.totalorder %s34, 0
      %p389 = por %p387, %p388
      %p390 = scmp.ne.s32.totalorder %s376, %s377
      %p391 = scmp.eq.s32.totalorder %s35, 1
      %p392 = por %p390, %p391
      %p394 = scmp.ne.s32.totalorder %s377, %s393
      %p395 = scmp.eq.s32.totalorder %s35, 0
      %p396 = por %p394, %p395
      %p397 = scmp.le.s32.totalorder 1, %s29
      %p398 = scmp.lt.s32.totalorder %s29, 3
      %p399 = pnand %p397, %p398
      %p400 = pneg %p399
      // Predicated region
      $region9: #{tpu_custom_call.1} parent=5 // pred_check
        _
      $region10: #{tpu_custom_call.1} parent=5 // pred_check_branch
        %402 = sbr.rel (%p399) target = $region12
      $region11: #{tpu_custom_call.1} parent=5 // pred_region
        %s403 = ssub.s32 %s29, 1
        // Predicated region
        $region13: #{tpu_custom_call.1} parent=11 // pred_check
          %p404 = pneg %p88
        $region14: #{tpu_custom_call.1} parent=11 // pred_check_branch
          %406 = sbr.rel (%p404) target = $region16
        $region15: #{tpu_custom_call.1} parent=11 // pred_region
          %s408 = ssub.s32 16, 16
          %409 = vsyncadd [#allocation4], %s408
          %s411 = sshll.u32 [#allocation3], 4
          %s412 = int_to_ptr.vmem [resolvable:$true] %s411
          %414 = dma.hbm_to_vmem [thread:$0]  %s1, 16, %s412, [#allocation4]
        $region16: #{tpu_custom_call.1} parent=11 // pred_fallthru
          _
        // Predicated region
        $region17: #{tpu_custom_call.1} parent=11 // pred_check
          %p415 = pneg %p109
        $region18: #{tpu_custom_call.1} parent=11 // pred_check_branch
          %417 = sbr.rel (%p415) target = $region20
        $region19: #{tpu_custom_call.1} parent=11 // pred_region
          %s419 = ssub.s32 16, 16
          %420 = vsyncadd [#allocation7], %s419
          %s422 = sshll.u32 [#allocation6], 4
          %s423 = int_to_ptr.vmem [resolvable:$true] %s422
          %425 = dma.hbm_to_vmem [thread:$0]  %s2, 16, %s423, [#allocation7]
        $region20: #{tpu_custom_call.1} parent=11 // pred_fallthru
          _
        // Predicated region
        $region21: #{tpu_custom_call.1} parent=11 // pred_check
          %p426 = pneg %p130
        $region22: #{tpu_custom_call.1} parent=11 // pred_check_branch
          %428 = sbr.rel (%p426) target = $region24
        $region23: #{tpu_custom_call.1} parent=11 // pred_region
          %s430 = ssub.s32 16, 16
          %431 = vsyncadd [#allocation7], %s430
          %s433 = sshll.u32 [#allocation8], 4
          %s434 = int_to_ptr.vmem [resolvable:$true] %s433
          %436 = dma.hbm_to_vmem [thread:$0]  %s3, 16, %s434, [#allocation7]
        $region24: #{tpu_custom_call.1} parent=11 // pred_fallthru
          _
        // Predicated region
        $region25: #{tpu_custom_call.1} parent=11 // pred_check
          %p437 = pneg %p151
        $region26: #{tpu_custom_call.1} parent=11 // pred_check_branch
          %439 = sbr.rel (%p437) target = $region28
        $region27: #{tpu_custom_call.1} parent=11 // pred_region
          %s441 = ssub.s32 16, 16
          %442 = vsyncadd [#allocation10], %s441
          %s444 = sshll.u32 [#allocation9], 4
          %s445 = int_to_ptr.vmem [resolvable:$true] %s444
          %447 = dma.hbm_to_vmem [thread:$0]  %s4, 16, %s445, [#allocation10]
        $region28: #{tpu_custom_call.1} parent=11 // pred_fallthru
          _
        // Predicated region
        $region29: #{tpu_custom_call.1} parent=11 // pred_check
          %p448 = pneg %p172
        $region30: #{tpu_custom_call.1} parent=11 // pred_check_branch
          %450 = sbr.rel (%p448) target = $region32
        $region31: #{tpu_custom_call.1} parent=11 // pred_region
          _
        $region32: #{tpu_custom_call.1} parent=11 // pred_fallthru
          _
        // Predicated region
        $region33: #{tpu_custom_call.1} parent=11 // pred_check
          %p451 = pneg %p193
        $region34: #{tpu_custom_call.1} parent=11 // pred_check_branch
          %453 = sbr.rel (%p451) target = $region36
        $region35: #{tpu_custom_call.1} parent=11 // pred_region
          %s455 = ssub.s32 32, 32
          %456 = vsyncadd [#allocation10], %s455
          %s458 = sshll.u32 [#allocation11], 4
          %s459 = int_to_ptr.vmem [resolvable:$true] %s458
          %461 = dma.hbm_to_vmem [thread:$0]  %s6, 32, %s459, [#allocation10]
        $region36: #{tpu_custom_call.1} parent=11 // pred_fallthru
          _
        // Predicated region
        $region37: #{tpu_custom_call.1} parent=11 // pred_check
          %p462 = pneg %p214
        $region38: #{tpu_custom_call.1} parent=11 // pred_check_branch
          %464 = sbr.rel (%p462) target = $region40
        $region39: #{tpu_custom_call.1} parent=11 // pred_region
          %s466 = ssub.s32 256, 256
          %467 = vsyncadd [#allocation13], %s466
          %s468 = sshll.u32 [#allocation12], 4
          %s469 = int_to_ptr.vmem [resolvable:$true] %s468
          %474 = dma.hbm_to_vmem [thread:$0]  %s7, 256, %s469, [#allocation13], 64, 64, 4
        $region40: #{tpu_custom_call.1} parent=11 // pred_fallthru
          _
        // Predicated region
        $region41: #{tpu_custom_call.1} parent=11 // pred_check
          %p475 = pneg %p235
        $region42: #{tpu_custom_call.1} parent=11 // pred_check_branch
          %477 = sbr.rel (%p475) target = $region44
        $region43: #{tpu_custom_call.1} parent=11 // pred_region
          %s479 = ssub.s32 16, 16
          %480 = vsyncadd [#allocation13], %s479
          %s482 = sshll.u32 [#allocation14], 4
          %s483 = int_to_ptr.vmem [resolvable:$true] %s482
          %485 = dma.hbm_to_vmem [thread:$0]  %s8, 16, %s483, [#allocation13]
        $region44: #{tpu_custom_call.1} parent=11 // pred_fallthru
          _
        // Predicated region
        $region45: #{tpu_custom_call.1} parent=11 // pred_check
          %p486 = pneg %p256
        $region46: #{tpu_custom_call.1} parent=11 // pred_check_branch
          %488 = sbr.rel (%p486) target = $region48
        $region47: #{tpu_custom_call.1} parent=11 // pred_region
          _
        $region48: #{tpu_custom_call.1} parent=11 // pred_fallthru
          _
        // Predicated region
        $region49: #{tpu_custom_call.1} parent=11 // pred_check
          %p489 = pneg %p277
        $region50: #{tpu_custom_call.1} parent=11 // pred_check_branch
          %491 = sbr.rel (%p489) target = $region52
        $region51: #{tpu_custom_call.1} parent=11 // pred_region
          _
        $region52: #{tpu_custom_call.1} parent=11 // pred_fallthru
          _
        // Predicated region
        $region53: #{tpu_custom_call.1} parent=11 // pred_check
          %p492 = pneg %p298
        $region54: #{tpu_custom_call.1} parent=11 // pred_check_branch
          %494 = sbr.rel (%p492) target = $region56
        $region55: #{tpu_custom_call.1} parent=11 // pred_region
          _
        $region56: #{tpu_custom_call.1} parent=11 // pred_fallthru
          _
        // Predicated region
        $region57: #{tpu_custom_call.1} parent=11 // pred_check
          %p495 = pneg %p319
        $region58: #{tpu_custom_call.1} parent=11 // pred_check_branch
          %497 = sbr.rel (%p495) target = $region60
        $region59: #{tpu_custom_call.1} parent=11 // pred_region
          %s499 = ssub.s32 16, 16
          %500 = vsyncadd [#allocation16], %s499
          %s502 = sshll.u32 [#allocation15], 4
          %s503 = int_to_ptr.vmem [resolvable:$true] %s502
          %505 = dma.hbm_to_vmem [thread:$0]  %s12, 16, %s503, [#allocation16]
        $region60: #{tpu_custom_call.1} parent=11 // pred_fallthru
          _
        // Predicated region
        $region61: #{tpu_custom_call.1} parent=11 // pred_check
          %p506 = pneg %p340
        $region62: #{tpu_custom_call.1} parent=11 // pred_check_branch
          %508 = sbr.rel (%p506) target = $region64
        $region63: #{tpu_custom_call.1} parent=11 // pred_region
          %s510 = ssub.s32 128, 128
          %511 = vsyncadd [#allocation16], %s510
          %s513 = sshll.u32 [#allocation17], 4
          %s514 = int_to_ptr.vmem [resolvable:$true] %s513
          %516 = dma.hbm_to_vmem [thread:$0]  %s13, 128, %s514, [#allocation16]
        $region64: #{tpu_custom_call.1} parent=11 // pred_fallthru
          _
        // Predicated region
        $region65: #{tpu_custom_call.1} parent=11 // pred_check
          %p517 = pneg %p361
        $region66: #{tpu_custom_call.1} parent=11 // pred_check_branch
          %519 = sbr.rel (%p517) target = $region68
        $region67: #{tpu_custom_call.1} parent=11 // pred_region
          _
        $region68: #{tpu_custom_call.1} parent=11 // pred_fallthru
          _
      $region12: #{tpu_custom_call.1} parent=5 // pred_fallthru
        _
      %p520 = scmp.lt.s32.totalorder %s29, 2
      // Predicated region
      $region69: #{tpu_custom_call.1} parent=5 // pred_check
        %p521 = pneg %p520
      $region70: #{tpu_custom_call.1} parent=5 // pred_check_branch
        %523 = sbr.rel (%p521) target = $region72
      $region71: #{tpu_custom_call.1} parent=5 // pred_region
        // Predicated region
        $region73: #{tpu_custom_call.1} parent=71 // pred_check
          %p524 = pneg %p61
        $region74: #{tpu_custom_call.1} parent=71 // pred_check_branch
          %526 = sbr.rel (%p524) target = $region76
        $region75: #{tpu_custom_call.1} parent=71 // pred_region
          %p527 = scmp.lt.s32.totalorder %s36, 1
          %s528 = scalar_select %p527, %s36, 1
          %s529 = smul.addr %s528, 8
          %s530 = scalar_lea.vmem %s0, %s529
        $region76: #{tpu_custom_call.1} parent=71 // pred_fallthru
          _
      $region72: #{tpu_custom_call.1} parent=5 // pred_fallthru
        _
      %p531 = scmp.le.s32.totalorder 1, %s29
      %p532 = scmp.lt.s32.totalorder %s29, 3
      %p533 = pnand %p531, %p532
      %p534 = pneg %p533
      // Predicated region
      $region77: #{tpu_custom_call.1} parent=5 // pred_check
        _
      $region78: #{tpu_custom_call.1} parent=5 // pred_check_branch
        %536 = sbr.rel (%p533) target = $region80
      $region79: #{tpu_custom_call.1} parent=5 // pred_region
        %s537 = ssub.s32 %s29, 1
        // Predicated region
        $region81: #{tpu_custom_call.1} parent=79 // pred_check
          %p538 = pneg %p88
        $region82: #{tpu_custom_call.1} parent=79 // pred_check_branch
          %540 = sbr.rel (%p538) target = $region84
        $region83: #{tpu_custom_call.1} parent=79 // pred_region
          %541 = dma.done [#allocation4], 16
        $region84: #{tpu_custom_call.1} parent=79 // pred_fallthru
          _
        // Predicated region
        $region85: #{tpu_custom_call.1} parent=79 // pred_check
          %p542 = pneg %p109
        $region86: #{tpu_custom_call.1} parent=79 // pred_check_branch
          %544 = sbr.rel (%p542) target = $region88
        $region87: #{tpu_custom_call.1} parent=79 // pred_region
          %545 = dma.done [#allocation7], 16
        $region88: #{tpu_custom_call.1} parent=79 // pred_fallthru
          _
        // Predicated region
        $region89: #{tpu_custom_call.1} parent=79 // pred_check
          %p546 = pneg %p130
        $region90: #{tpu_custom_call.1} parent=79 // pred_check_branch
          %548 = sbr.rel (%p546) target = $region92
        $region91: #{tpu_custom_call.1} parent=79 // pred_region
          %549 = dma.done [#allocation7], 16
        $region92: #{tpu_custom_call.1} parent=79 // pred_fallthru
          _
        // Predicated region
        $region93: #{tpu_custom_call.1} parent=79 // pred_check
          %p550 = pneg %p151
        $region94: #{tpu_custom_call.1} parent=79 // pred_check_branch
          %552 = sbr.rel (%p550) target = $region96
        $region95: #{tpu_custom_call.1} parent=79 // pred_region
          %553 = dma.done [#allocation10], 16
        $region96: #{tpu_custom_call.1} parent=79 // pred_fallthru
          _
        // Predicated region
        $region97: #{tpu_custom_call.1} parent=79 // pred_check
          %p554 = pneg %p193
        $region98: #{tpu_custom_call.1} parent=79 // pred_check_branch
          %556 = sbr.rel (%p554) target = $region100
        $region99: #{tpu_custom_call.1} parent=79 // pred_region
          %557 = dma.done [#allocation10], 32
        $region100: #{tpu_custom_call.1} parent=79 // pred_fallthru
          _
        // Predicated region
        $region101: #{tpu_custom_call.1} parent=79 // pred_check
          %p558 = pneg %p214
        $region102: #{tpu_custom_call.1} parent=79 // pred_check_branch
          %560 = sbr.rel (%p558) target = $region104
        $region103: #{tpu_custom_call.1} parent=79 // pred_region
          %561 = dma.done [#allocation13], 256
        $region104: #{tpu_custom_call.1} parent=79 // pred_fallthru
          _
        // Predicated region
        $region105: #{tpu_custom_call.1} parent=79 // pred_check
          %p562 = pneg %p235
        $region106: #{tpu_custom_call.1} parent=79 // pred_check_branch
          %564 = sbr.rel (%p562) target = $region108
        $region107: #{tpu_custom_call.1} parent=79 // pred_region
          %565 = dma.done [#allocation13], 16
        $region108: #{tpu_custom_call.1} parent=79 // pred_fallthru
          _
        // Predicated region
        $region109: #{tpu_custom_call.1} parent=79 // pred_check
          %p566 = pneg %p319
        $region110: #{tpu_custom_call.1} parent=79 // pred_check_branch
          %568 = sbr.rel (%p566) target = $region112
        $region111: #{tpu_custom_call.1} parent=79 // pred_region
          %569 = dma.done [#allocation16], 16
        $region112: #{tpu_custom_call.1} parent=79 // pred_fallthru
          _
        // Predicated region
        $region113: #{tpu_custom_call.1} parent=79 // pred_check
          %p570 = pneg %p340
        $region114: #{tpu_custom_call.1} parent=79 // pred_check_branch
          %572 = sbr.rel (%p570) target = $region116
        $region115: #{tpu_custom_call.1} parent=79 // pred_region
          %573 = dma.done [#allocation16], 128
        $region116: #{tpu_custom_call.1} parent=79 // pred_fallthru
          _
        %p574 = scmp.lt.s32.totalorder %s38, 1
        %s575 = scalar_select %p574, %s38, 1
        %s576 = smul.addr %s575, 8
        %s577 = scalar_lea.vmem %s0, %s576
        %p578 = pneg %p67
        %p579 = pneg %p64
        %p580 = pneg %p88
        %p581 = pneg %p85
        %p582 = pneg %p109
        %p583 = pneg %p106
        %p584 = pneg %p130
        %p585 = pneg %p127
        %p586 = pneg %p151
        %p587 = pneg %p148
        %p588 = pneg %p172
        %p589 = pneg %p169
        %p590 = pneg %p193
        %p591 = pneg %p190
        %p592 = pneg %p214
        %p593 = pneg %p211
        %p594 = pneg %p235
        %p595 = pneg %p232
        %p596 = pneg %p256
        %p597 = pneg %p253
        %p598 = pneg %p277
        %p599 = pneg %p274
        %p600 = pneg %p298
        %p601 = pneg %p295
        %p602 = pneg %p319
        %p603 = pneg %p316
        %p604 = pneg %p340
        %p605 = pneg %p337
        %p606 = pneg %p361
        %p607 = pneg %p358
        %p608 = pneg %p389
        %p609 = pneg %p386
        %s610 = sand.u32 %s376, 1
        %s611 = scalar_lea.sflag [#allocation5], %s610
        %s612 = sand.u32 %s376, 1
        %s613 = smul.addr %s612, 8
        %s614 = scalar_lea.vmem [#allocation18], %s613
        %p615 = scmp.lt.s32.totalorder %s38, 1
        %s616 = scalar_select %p615, %s38, 1
        %s617 = smul.addr %s616, 8
        %s618 = scalar_lea.vmem %s0, %s617
        %s620 = smul.u32 %s39, 8
        %v621 = vld [vmem:[#allocation3] sm:$0x1]
        %v622 = vld [vmem:[#allocation6] sm:$0x1]
        %v623 = vld [vmem:[%s618] sm:$0xff]
        %s624 = scalar_lea.vmem %s618, %s620
        %v625 = vld [vmem:[%s624] sm:$0xff]
        %vm626 = vcmask 261120
        %v627 = vsel %vm626, %v623, 0.0
        %628 = vadd.xlane.f32.xlu0 %v627
        %v629 = vpop.xlane.xlu0 %628
        %v630 = vrcp.pop 32.0
        %v631 = vmul.f32 %v629, %v630
        %v632 = vsub.f32 %v623, %v631
        %v633 = vmul.f32 %v632, %v632
        %v634 = vsel %vm626, %v633, 0.0
        %635 = vadd.xlane.f32.xlu0 %v634
        %v636 = vpop.xlane.xlu0 %635
        %v637 = vmul.f32 %v636, %v630
        %v638 = vadd.f32 %v637, 1e-05
        %v639 = vrsqrt.pop %v638
        %v640 = vmul.f32 %v632, %v639
        %v642 = vlaneseq
        %v643 = vshrl.u32 %v642, 7
        %v644 = vsub.s32 0, %v643
        %v645 = vrot.slane %v621, %v644
        %v647 = vmul.f32 %v640, %v645
        %v649 = vlaneseq
        %v650 = vshrl.u32 %v649, 7
        %v651 = vsub.s32 0, %v650
        %v652 = vrot.slane %v622, %v651
        %v654 = vadd.f32 %v647, %v652
        %v655 = vpack.c.bf16 %v654, %v654
        %v656 = vsel %vm626, %v625, 0.0
        %657 = vadd.xlane.f32.xlu0 %v656
        %v658 = vpop.xlane.xlu0 %657
        %v659 = vmul.f32 %v658, %v630
        %v660 = vsub.f32 %v625, %v659
        %v661 = vmul.f32 %v660, %v660
        %v662 = vsel %vm626, %v661, 0.0
        %663 = vadd.xlane.f32.xlu0 %v662
        %v664 = vpop.xlane.xlu0 %663
        %v665 = vmul.f32 %v664, %v630
        %v666 = vadd.f32 %v665, 1e-05
        %v667 = vrsqrt.pop %v666
        %v668 = vmul.f32 %v660, %v667
        %v669 = vmul.f32 %v668, %v645
        %v670 = vadd.f32 %v669, %v652
        %v671 = vpack.c.bf16 %v670, %v670
        %v672 = vld [vmem:[#allocation17] sm:$0xff]
        %674 = vrot.lane.b32.xlu0 %v672, 8
        %v675 = vpop.permute.xlu0 %674
        %677 = vrot.lane.b32.xlu0 %v672, 16
        %v678 = vpop.permute.xlu0 %677
        %680 = vrot.lane.b32.xlu0 %v672, 24
        %v681 = vpop.permute.xlu0 %680
        %vm683 = vcmask 64512
        %v684 = vsel %vm683, %v672, %v675
        %vm685 = vcmask 130048
        %v686 = vsel %vm685, %v684, %v678
        %vm687 = vcmask 195584
        %v688 = vsel %vm687, %v686, %v681
        %v689 = vld [vmem:[%s14] sm:$0xff]
        %691 = vrot.lane.b32.xlu0 %v689, 8
        %v692 = vpop.permute.xlu0 %691
        %694 = vrot.lane.b32.xlu0 %v689, 16
        %v695 = vpop.permute.xlu0 %694
        %697 = vrot.lane.b32.xlu0 %v689, 24
        %v698 = vpop.permute.xlu0 %697
        %v700 = vsel %vm683, %v689, %v692
        %v701 = vsel %vm685, %v700, %v695
        %v702 = vsel %vm687, %v701, %v698
        %s703 = scalar_lea.vmem [#allocation17], %s620
        %v704 = vld [vmem:[%s703] sm:$0xff]
        %706 = vrot.lane.b32.xlu0 %v704, 8
        %v707 = vpop.permute.xlu0 %706
        %709 = vrot.lane.b32.xlu0 %v704, 16
        %v710 = vpop.permute.xlu0 %709
        %712 = vrot.lane.b32.xlu0 %v704, 24
        %v713 = vpop.permute.xlu0 %712
        %v715 = vsel %vm683, %v704, %v707
        %v716 = vsel %vm685, %v715, %v710
        %v717 = vsel %vm687, %v716, %v713
        %s718 = scalar_lea.vmem %s14, %s620
        %v719 = vld [vmem:[%s718] sm:$0xff]
        %721 = vrot.lane.b32.xlu0 %v719, 8
        %v722 = vpop.permute.xlu0 %721
        %724 = vrot.lane.b32.xlu0 %v719, 16
        %v725 = vpop.permute.xlu0 %724
        %727 = vrot.lane.b32.xlu0 %v719, 24
        %v728 = vpop.permute.xlu0 %727
        %v730 = vsel %vm683, %v719, %v722
        %v731 = vsel %vm685, %v730, %v725
        %v732 = vsel %vm687, %v731, %v728
        %v733 = vld [vmem:[%s5] sm:$0xf]
        %v734 = vld [vmem:[%s5 + $0x8] sm:$0xf]
        %v735 = vld [vmem:[%s5 + $0x10] sm:$0xf]
        %v736 = vld [vmem:[%s5 + $0x18] sm:$0xf]
        %v737 = vld [vmem:[#allocation11] sm:$0x1]
        %v739 = vlaneseq
        %v740 = vshrl.u32 %v739, 7
        %v741 = vsub.s32 0, %v740
        %v742 = vrot.slane %v737, %v741
        %v748 = vunpack.c.l.b16 %v733
        %v749 = vunpack.c.l.b16 %v734
        %v750 = vunpack.c.l.b16 %v735
        %v751 = vunpack.c.l.b16 %v736
        %v752 = vpack.c.b16 %v749, %v748
        %v753 = vpack.c.b16 %v751, %v750
        %v757 = vsel %vm626, %v671, 0
        %759 = vmatprep.subr.bf16.mxu0 0
        %760 = vmatpush1.bf16.msra.mxu0 0
        %761 = vmatprep.subr.bf16.mxu0 0
        %762 = vmatpush1.bf16.msra.mxu0 0
        %763 = vmatprep.subr.bf16.mxu0 0
        %764 = vmatpush1.bf16.msra.mxu0 0
        %765 = vmatprep.subr.bf16.mxu0 0
        %766 = vmatpush1.bf16.msra.mxu0 0
        %767 = vmatprep.subr.bf16.mxu0 0
        %768 = vmatpush1.bf16.msra.mxu0 0
        %769 = vmatprep.subr.bf16.mxu0 0
        %770 = vmatpush1.bf16.msra.mxu0 0
        %771 = vmatprep.subr.bf16.mxu0 0
        %772 = vmatpush1.bf16.msra.mxu0 %v753
        %773 = vmatprep.subr.bf16.mxu0 0
        %774 = vmatpush1.bf16.msra.mxu0 %v752
        %775 = vmatprep.subr.bf16.mxu0 0
        %776 = vmatpush2.bf16.msra.mxu0 0
        %777 = vmatprep.subr.bf16.mxu0 0
        %778 = vmatpush2.bf16.msra.mxu0 0
        %779 = vmatprep.subr.bf16.mxu0 0
        %780 = vmatpush2.bf16.msra.mxu0 0
        %781 = vmatprep.subr.bf16.mxu0 0
        %782 = vmatpush2.bf16.msra.mxu0 0
        %783 = vmatprep.subr.bf16.mxu0 0
        %784 = vmatpush2.bf16.msra.mxu0 0
        %785 = vmatprep.subr.bf16.mxu0 0
        %786 = vmatpush2.bf16.msra.mxu0 0
        %787 = vmatprep.subr.bf16.mxu0 0
        %788 = vmatpush2.bf16.msra.mxu0 0
        %789 = vmatprep.subr.bf16.mxu0 0
        %790 = vmatpush2.bf16.msra.mxu0 0
        %791 = vmatprep.mubr.bf16.mxu0 0
        %792 = vmatmul.mubr.bf16.gmra.mxu0 %v757
        %v793 = vpop.f32.mrf.mxu0
        %v794 = vadd.f32 %v742, %v793
        %v795 = vpop.f32.mrf.mxu0
        %v796 = vpop.f32.mrf.mxu0
        %v797 = vpop.f32.mrf.mxu0
        %798 = vdwg.mxu0
        %799 = vrot.lane.b32.xlu0 %v752, 96
        %v800 = vpop.permute.xlu0 %799
        %801 = vrot.lane.b32.xlu0 %v753, 96
        %v802 = vpop.permute.xlu0 %801
        %805 = vrot.lane.b32.xlu0 %v742, 96
        %v806 = vpop.permute.xlu0 %805
        %808 = vmatprep.subr.bf16.mxu0 0
        %809 = vmatpush1.bf16.msra.mxu0 0
        %810 = vmatprep.subr.bf16.mxu0 0
        %811 = vmatpush1.bf16.msra.mxu0 0
        %812 = vmatprep.subr.bf16.mxu0 0
        %813 = vmatpush1.bf16.msra.mxu0 0
        %814 = vmatprep.subr.bf16.mxu0 0
        %815 = vmatpush1.bf16.msra.mxu0 0
        %816 = vmatprep.subr.bf16.mxu0 0
        %817 = vmatpush1.bf16.msra.mxu0 0
        %818 = vmatprep.subr.bf16.mxu0 0
        %819 = vmatpush1.bf16.msra.mxu0 0
        %820 = vmatprep.subr.bf16.mxu0 0
        %821 = vmatpush1.bf16.msra.mxu0 %v802
        %822 = vmatprep.subr.bf16.mxu0 0
        %823 = vmatpush1.bf16.msra.mxu0 %v800
        %824 = vmatprep.subr.bf16.mxu0 0
        %825 = vmatpush2.bf16.msra.mxu0 0
        %826 = vmatprep.subr.bf16.mxu0 0
        %827 = vmatpush2.bf16.msra.mxu0 0
        %828 = vmatprep.subr.bf16.mxu0 0
        %829 = vmatpush2.bf16.msra.mxu0 0
        %830 = vmatprep.subr.bf16.mxu0 0
        %831 = vmatpush2.bf16.msra.mxu0 0
        %832 = vmatprep.subr.bf16.mxu0 0
        %833 = vmatpush2.bf16.msra.mxu0 0
        %834 = vmatprep.subr.bf16.mxu0 0
        %835 = vmatpush2.bf16.msra.mxu0 0
        %836 = vmatprep.subr.bf16.mxu0 0
        %837 = vmatpush2.bf16.msra.mxu0 0
        %838 = vmatprep.subr.bf16.mxu0 0
        %839 = vmatpush2.bf16.msra.mxu0 0
        %840 = vmatprep.mubr.bf16.mxu0 0
        %841 = vmatmul.mubr.bf16.gmra.mxu0 %v757
        %v842 = vpop.f32.mrf.mxu0
        %v843 = vadd.f32 %v806, %v842
        %v844 = vpop.f32.mrf.mxu0
        %v845 = vpop.f32.mrf.mxu0
        %v846 = vpop.f32.mrf.mxu0
        %847 = vdwg.mxu0
        %v848 = vmul.f32 %v794, %v717
        %v849 = vmul.f32 %v843, %v732
        %v850 = vadd.f32 %v848, %v849
        %v851 = vmul.f32 %v850, 0.35355338
        %v852 = vpack.c.bf16 %v851, %v851
        %853 = vrot.lane.b32.xlu0 %v752, 64
        %v854 = vpop.permute.xlu0 %853
        %855 = vrot.lane.b32.xlu0 %v753, 64
        %v856 = vpop.permute.xlu0 %855
        %859 = vrot.lane.b32.xlu0 %v742, 64
        %v860 = vpop.permute.xlu0 %859
        %v863 = vsel %vm626, %v655, 0
        %865 = vmatprep.subr.bf16.mxu0 0
        %866 = vmatpush1.bf16.msra.mxu0 0
        %867 = vmatprep.subr.bf16.mxu0 0
        %868 = vmatpush1.bf16.msra.mxu0 0
        %869 = vmatprep.subr.bf16.mxu0 0
        %870 = vmatpush1.bf16.msra.mxu0 0
        %871 = vmatprep.subr.bf16.mxu0 0
        %872 = vmatpush1.bf16.msra.mxu0 0
        %873 = vmatprep.subr.bf16.mxu0 0
        %874 = vmatpush1.bf16.msra.mxu0 0
        %875 = vmatprep.subr.bf16.mxu0 0
        %876 = vmatpush1.bf16.msra.mxu0 0
        %877 = vmatprep.subr.bf16.mxu0 0
        %878 = vmatpush1.bf16.msra.mxu0 %v856
        %879 = vmatprep.subr.bf16.mxu0 0
        %880 = vmatpush1.bf16.msra.mxu0 %v854
        %881 = vmatprep.subr.bf16.mxu0 0
        %882 = vmatpush2.bf16.msra.mxu0 0
        %883 = vmatprep.subr.bf16.mxu0 0
        %884 = vmatpush2.bf16.msra.mxu0 0
        %885 = vmatprep.subr.bf16.mxu0 0
        %886 = vmatpush2.bf16.msra.mxu0 0
        %887 = vmatprep.subr.bf16.mxu0 0
        %888 = vmatpush2.bf16.msra.mxu0 0
        %889 = vmatprep.subr.bf16.mxu0 0
        %890 = vmatpush2.bf16.msra.mxu0 0
        %891 = vmatprep.subr.bf16.mxu0 0
        %892 = vmatpush2.bf16.msra.mxu0 0
        %893 = vmatprep.subr.bf16.mxu0 0
        %894 = vmatpush2.bf16.msra.mxu0 0
        %895 = vmatprep.subr.bf16.mxu0 0
        %896 = vmatpush2.bf16.msra.mxu0 0
        %897 = vmatprep.mubr.bf16.mxu0 0
        %898 = vmatmul.mubr.bf16.gmra.mxu0 %v863
        %v899 = vpop.f32.mrf.mxu0
        %v900 = vadd.f32 %v860, %v899
        %v901 = vpop.f32.mrf.mxu0
        %v902 = vpop.f32.mrf.mxu0
        %v903 = vpop.f32.mrf.mxu0
        %904 = vdwg.mxu0
        %905 = vrot.lane.b32.xlu0 %v752, 32
        %v906 = vpop.permute.xlu0 %905
        %907 = vrot.lane.b32.xlu0 %v753, 32
        %v908 = vpop.permute.xlu0 %907
        %911 = vrot.lane.b32.xlu0 %v742, 32
        %v912 = vpop.permute.xlu0 %911
        %914 = vmatprep.subr.bf16.mxu0 0
        %915 = vmatpush1.bf16.msra.mxu0 0
        %916 = vmatprep.subr.bf16.mxu0 0
        %917 = vmatpush1.bf16.msra.mxu0 0
        %918 = vmatprep.subr.bf16.mxu0 0
        %919 = vmatpush1.bf16.msra.mxu0 0
        %920 = vmatprep.subr.bf16.mxu0 0
        %921 = vmatpush1.bf16.msra.mxu0 0
        %922 = vmatprep.subr.bf16.mxu0 0
        %923 = vmatpush1.bf16.msra.mxu0 0
        %924 = vmatprep.subr.bf16.mxu0 0
        %925 = vmatpush1.bf16.msra.mxu0 0
        %926 = vmatprep.subr.bf16.mxu0 0
        %927 = vmatpush1.bf16.msra.mxu0 %v908
        %928 = vmatprep.subr.bf16.mxu0 0
        %929 = vmatpush1.bf16.msra.mxu0 %v906
        %930 = vmatprep.subr.bf16.mxu0 0
        %931 = vmatpush2.bf16.msra.mxu0 0
        %932 = vmatprep.subr.bf16.mxu0 0
        %933 = vmatpush2.bf16.msra.mxu0 0
        %934 = vmatprep.subr.bf16.mxu0 0
        %935 = vmatpush2.bf16.msra.mxu0 0
        %936 = vmatprep.subr.bf16.mxu0 0
        %937 = vmatpush2.bf16.msra.mxu0 0
        %938 = vmatprep.subr.bf16.mxu0 0
        %939 = vmatpush2.bf16.msra.mxu0 0
        %940 = vmatprep.subr.bf16.mxu0 0
        %941 = vmatpush2.bf16.msra.mxu0 0
        %942 = vmatprep.subr.bf16.mxu0 0
        %943 = vmatpush2.bf16.msra.mxu0 0
        %944 = vmatprep.subr.bf16.mxu0 0
        %945 = vmatpush2.bf16.msra.mxu0 0
        %946 = vmatprep.mubr.bf16.mxu0 0
        %947 = vmatmul.mubr.bf16.gmra.mxu0 %v863
        %v948 = vpop.f32.mrf.mxu0
        %v949 = vadd.f32 %v912, %v948
        %v950 = vpop.f32.mrf.mxu0
        %v951 = vpop.f32.mrf.mxu0
        %v952 = vpop.f32.mrf.mxu0
        %953 = vdwg.mxu0
        %v954 = vmul.f32 %v900, %v688
        %v955 = vmul.f32 %v949, %v702
        %v956 = vadd.f32 %v954, %v955
        %v957 = vpack.c.bf16 %v956, %v956
        %v958 = vld [vmem:[%s5 + $0x4] sm:$0xf]
        %v959 = vld [vmem:[%s5 + $0xc] sm:$0xf]
        %v960 = vld [vmem:[%s5 + $0x14] sm:$0xf]
        %v961 = vld [vmem:[%s5 + $0x1c] sm:$0xf]
        %v962 = vld [vmem:[#allocation11 + $0x1] sm:$0x1]
        %v964 = vlaneseq
        %v965 = vshrl.u32 %v964, 7
        %v966 = vsub.s32 0, %v965
        %v967 = vrot.slane %v962, %v966
        %v973 = vunpack.c.l.b16 %v958
        %v974 = vunpack.c.l.b16 %v959
        %v975 = vunpack.c.l.b16 %v960
        %v976 = vunpack.c.l.b16 %v961
        %v977 = vpack.c.b16 %v974, %v973
        %v978 = vpack.c.b16 %v976, %v975
        %981 = vmatprep.subr.bf16.mxu0 0
        %982 = vmatpush1.bf16.msra.mxu0 0
        %983 = vmatprep.subr.bf16.mxu0 0
        %984 = vmatpush1.bf16.msra.mxu0 0
        %985 = vmatprep.subr.bf16.mxu0 0
        %986 = vmatpush1.bf16.msra.mxu0 0
        %987 = vmatprep.subr.bf16.mxu0 0
        %988 = vmatpush1.bf16.msra.mxu0 0
        %989 = vmatprep.subr.bf16.mxu0 0
        %990 = vmatpush1.bf16.msra.mxu0 0
        %991 = vmatprep.subr.bf16.mxu0 0
        %992 = vmatpush1.bf16.msra.mxu0 0
        %993 = vmatprep.subr.bf16.mxu0 0
        %994 = vmatpush1.bf16.msra.mxu0 %v978
        %995 = vmatprep.subr.bf16.mxu0 0
        %996 = vmatpush1.bf16.msra.mxu0 %v977
        %997 = vmatprep.subr.bf16.mxu0 0
        %998 = vmatpush2.bf16.msra.mxu0 0
        %999 = vmatprep.subr.bf16.mxu0 0
        %1000 = vmatpush2.bf16.msra.mxu0 0
        %1001 = vmatprep.subr.bf16.mxu0 0
        %1002 = vmatpush2.bf16.msra.mxu0 0
        %1003 = vmatprep.subr.bf16.mxu0 0
        %1004 = vmatpush2.bf16.msra.mxu0 0
        %1005 = vmatprep.subr.bf16.mxu0 0
        %1006 = vmatpush2.bf16.msra.mxu0 0
        %1007 = vmatprep.subr.bf16.mxu0 0
        %1008 = vmatpush2.bf16.msra.mxu0 0
        %1009 = vmatprep.subr.bf16.mxu0 0
        %1010 = vmatpush2.bf16.msra.mxu0 0
        %1011 = vmatprep.subr.bf16.mxu0 0
        %1012 = vmatpush2.bf16.msra.mxu0 0
        %1013 = vmatprep.mubr.bf16.mxu0 0
        %1014 = vmatmul.mubr.bf16.gmra.mxu0 %v863
        %v1015 = vpop.f32.mrf.mxu0
        %v1016 = vadd.f32 %v967, %v1015
        %v1017 = vpop.f32.mrf.mxu0
        %v1018 = vpop.f32.mrf.mxu0
        %v1019 = vpop.f32.mrf.mxu0
        %1020 = vdwg.mxu0
        %v1021 = vpack.c.bf16 %v1016, %v1016
        %v1022 = vlaneseq
        %v1023 = vshrl.u32 %v1022, 7
        %v1024 = vstv %s620
        %v1025 = vadd.s32 %v1024, %v1023
        %v1026 = vlaneseq
        %v1027 = vand.u32 %v1026, 127
        %vm1028 = vcmp.le.s32.totalorder %v1027, %v1025
        %v1030 = vsel %vm683, %v852, 0
        %v1033 = vsel %vm683, %v957, 0
        %1035 = vmatprep.subr.bf16.mxu0 0
        %1036 = vmatpush1.bf16.xpose.msra.mxu0 0
        %1037 = vmatprep.subr.bf16.mxu0 0
        %1038 = vmatpush1.bf16.xpose.msra.mxu0 0
        %1039 = vmatprep.subr.bf16.mxu0 0
        %1040 = vmatpush1.bf16.xpose.msra.mxu0 0
        %1041 = vmatprep.subr.bf16.mxu0 0
        %1042 = vmatpush1.bf16.xpose.msra.mxu0 0
        %1043 = vmatprep.subr.bf16.mxu0 0
        %1044 = vmatpush1.bf16.xpose.msra.mxu0 0
        %1045 = vmatprep.subr.bf16.mxu0 0
        %1046 = vmatpush1.bf16.xpose.msra.mxu0 0
        %1047 = vmatprep.subr.bf16.mxu0 0
        %1048 = vmatpush1.bf16.xpose.msra.mxu0 0
        %1049 = vmatprep.subr.bf16.mxu0 0
        %1050 = vmatpush1.bf16.xpose.msra.mxu0 %v1033
        %1051 = vmatprep.subr.bf16.mxu0 0
        %1052 = vmatpush2.bf16.xpose.msra.mxu0 0
        %1053 = vmatprep.subr.bf16.mxu0 0
        %1054 = vmatpush2.bf16.xpose.msra.mxu0 0
        %1055 = vmatprep.subr.bf16.mxu0 0
        %1056 = vmatpush2.bf16.xpose.msra.mxu0 0
        %1057 = vmatprep.subr.bf16.mxu0 0
        %1058 = vmatpush2.bf16.xpose.msra.mxu0 0
        %1059 = vmatprep.subr.bf16.mxu0 0
        %1060 = vmatpush2.bf16.xpose.msra.mxu0 0
        %1061 = vmatprep.subr.bf16.mxu0 0
        %1062 = vmatpush2.bf16.xpose.msra.mxu0 0
        %1063 = vmatprep.subr.bf16.mxu0 0
        %1064 = vmatpush2.bf16.xpose.msra.mxu0 0
        %1065 = vmatprep.subr.bf16.mxu0 0
        %1066 = vmatpush2.bf16.xpose.msra.mxu0 0
        %1067 = vmatprep.mubr.bf16.mxu0 0
        %1068 = vmatmul.mubr.bf16.gmra.mxu0 %v1030
        %v1069 = vpop.f32.mrf.mxu0
        %v1070 = vadd.f32 0.0, %v1069
        %v1071 = vpop.f32.mrf.mxu0
        %v1072 = vpop.f32.mrf.mxu0
        %v1073 = vpop.f32.mrf.mxu0
        %1074 = vdwg.mxu0
        %v1075 = vsel %vm1028, %v1070, -inf
        %v1076 = vsel %vm683, %v1075, -inf
        %1077 = vmax.xlane.f32.xlu0 %v1076
        %v1078 = vpop.xlane.xlu0 %1077
        %v1079 = vsub.f32 %v1075, %v1078
        %v1080 = vmul.f32 %v1079, 1.442695
        %v1081 = vpow.pop %v1080
        %v1082 = vsel %vm683, %v1081, 0.0
        %1083 = vadd.xlane.f32.xlu0 %v1082
        %v1084 = vpop.xlane.xlu0 %1083
        %v1085 = vrcp.pop %v1084
        %v1086 = vmul.f32 %v1081, %v1085
        %v1087 = vpack.c.bf16 %v1086, %v1086
        %v1089 = vsel %vm683, %v1087, 0
        %vm1091 = vcmask 1043456
        %v1093 = vsel %vm1091, %v1021, 0
        %1095 = vmatprep.subr.bf16.mxu0 0
        %1096 = vmatpush1.bf16.msra.mxu0 0
        %1097 = vmatprep.subr.bf16.mxu0 0
        %1098 = vmatpush1.bf16.msra.mxu0 0
        %1099 = vmatprep.subr.bf16.mxu0 0
        %1100 = vmatpush1.bf16.msra.mxu0 0
        %1101 = vmatprep.subr.bf16.mxu0 0
        %1102 = vmatpush1.bf16.msra.mxu0 0
        %1103 = vmatprep.subr.bf16.mxu0 0
        %1104 = vmatpush1.bf16.msra.mxu0 0
        %1105 = vmatprep.subr.bf16.mxu0 0
        %1106 = vmatpush1.bf16.msra.mxu0 0
        %1107 = vmatprep.subr.bf16.mxu0 0
        %1108 = vmatpush1.bf16.msra.mxu0 0
        %1109 = vmatprep.subr.bf16.mxu0 0
        %1110 = vmatpush1.bf16.msra.mxu0 %v1093
        %1111 = vmatprep.subr.bf16.mxu0 0
        %1112 = vmatpush2.bf16.msra.mxu0 0
        %1113 = vmatprep.subr.bf16.mxu0 0
        %1114 = vmatpush2.bf16.msra.mxu0 0
        %1115 = vmatprep.subr.bf16.mxu0 0
        %1116 = vmatpush2.bf16.msra.mxu0 0
        %1117 = vmatprep.subr.bf16.mxu0 0
        %1118 = vmatpush2.bf16.msra.mxu0 0
        %1119 = vmatprep.subr.bf16.mxu0 0
        %1120 = vmatpush2.bf16.msra.mxu0 0
        %1121 = vmatprep.subr.bf16.mxu0 0
        %1122 = vmatpush2.bf16.msra.mxu0 0
        %1123 = vmatprep.subr.bf16.mxu0 0
        %1124 = vmatpush2.bf16.msra.mxu0 0
        %1125 = vmatprep.subr.bf16.mxu0 0
        %1126 = vmatpush2.bf16.msra.mxu0 0
        %1127 = vmatprep.mubr.bf16.mxu0 0
        %1128 = vmatmul.mubr.bf16.gmra.mxu0 %v1089
        %v1129 = vpop.f32.mrf.mxu0
        %v1130 = vadd.f32 0.0, %v1129
        %v1131 = vpop.f32.mrf.mxu0
        %v1132 = vpop.f32.mrf.mxu0
        %v1133 = vpop.f32.mrf.mxu0
        %1134 = vdwg.mxu0
        %1135 = vst.msk [vmem:[#allocation2] sm:$0xff] %vm683, %v1130
        %1137 = vrot.lane.b32.xlu0 %v852, 120
        %v1138 = vpop.permute.xlu0 %1137
        %1140 = vrot.lane.b32.xlu0 %v957, 120
        %v1141 = vpop.permute.xlu0 %1140
        %v1143 = vsel %vm683, %v1138, 0
        %v1146 = vsel %vm683, %v1141, 0
        %1148 = vmatprep.subr.bf16.mxu0 0
        %1149 = vmatpush1.bf16.xpose.msra.mxu0 0
        %1150 = vmatprep.subr.bf16.mxu0 0
        %1151 = vmatpush1.bf16.xpose.msra.mxu0 0
        %1152 = vmatprep.subr.bf16.mxu0 0
        %1153 = vmatpush1.bf16.xpose.msra.mxu0 0
        %1154 = vmatprep.subr.bf16.mxu0 0
        %1155 = vmatpush1.bf16.xpose.msra.mxu0 0
        %1156 = vmatprep.subr.bf16.mxu0 0
        %1157 = vmatpush1.bf16.xpose.msra.mxu0 0
        %1158 = vmatprep.subr.bf16.mxu0 0
        %1159 = vmatpush1.bf16.xpose.msra.mxu0 0
        %1160 = vmatprep.subr.bf16.mxu0 0
        %1161 = vmatpush1.bf16.xpose.msra.mxu0 0
        %1162 = vmatprep.subr.bf16.mxu0 0
        %1163 = vmatpush1.bf16.xpose.msra.mxu0 %v1146
        %1164 = vmatprep.subr.bf16.mxu0 0
        %1165 = vmatpush2.bf16.xpose.msra.mxu0 0
        %1166 = vmatprep.subr.bf16.mxu0 0
        %1167 = vmatpush2.bf16.xpose.msra.mxu0 0
        %1168 = vmatprep.subr.bf16.mxu0 0
        %1169 = vmatpush2.bf16.xpose.msra.mxu0 0
        %1170 = vmatprep.subr.bf16.mxu0 0
        %1171 = vmatpush2.bf16.xpose.msra.mxu0 0
        %1172 = vmatprep.subr.bf16.mxu0 0
        %1173 = vmatpush2.bf16.xpose.msra.mxu0 0
        %1174 = vmatprep.subr.bf16.mxu0 0
        %1175 = vmatpush2.bf16.xpose.msra.mxu0 0
        %1176 = vmatprep.subr.bf16.mxu0 0
        %1177 = vmatpush2.bf16.xpose.msra.mxu0 0
        %1178 = vmatprep.subr.bf16.mxu0 0
        %1179 = vmatpush2.bf16.xpose.msra.mxu0 0
        %1180 = vmatprep.mubr.bf16.mxu0 0
        %1181 = vmatmul.mubr.bf16.gmra.mxu0 %v1143
        %v1182 = vpop.f32.mrf.mxu0
        %v1183 = vadd.f32 0.0, %v1182
        %v1184 = vpop.f32.mrf.mxu0
        %v1185 = vpop.f32.mrf.mxu0
        %v1186 = vpop.f32.mrf.mxu0
        %1187 = vdwg.mxu0
        %v1188 = vsel %vm1028, %v1183, -inf
        %v1189 = vsel %vm683, %v1188, -inf
        %1190 = vmax.xlane.f32.xlu0 %v1189
        %v1191 = vpop.xlane.xlu0 %1190
        %v1192 = vsub.f32 %v1188, %v1191
        %v1193 = vmul.f32 %v1192, 1.442695
        %v1194 = vpow.pop %v1193
        %v1195 = vsel %vm683, %v1194, 0.0
        %1196 = vadd.xlane.f32.xlu0 %v1195
        %v1197 = vpop.xlane.xlu0 %1196
        %v1198 = vrcp.pop %v1197
        %v1199 = vmul.f32 %v1194, %v1198
        %v1200 = vpack.c.bf16 %v1199, %v1199
        %1202 = vrot.lane.b32.xlu0 %v1021, 120
        %v1203 = vpop.permute.xlu0 %1202
        %v1205 = vsel %vm683, %v1200, 0
        %v1208 = vsel %vm1091, %v1203, 0
        %1210 = vmatprep.subr.bf16.mxu0 0
        %1211 = vmatpush1.bf16.msra.mxu0 0
        %1212 = vmatprep.subr.bf16.mxu0 0
        %1213 = vmatpush1.bf16.msra.mxu0 0
        %1214 = vmatprep.subr.bf16.mxu0 0
        %1215 = vmatpush1.bf16.msra.mxu0 0
        %1216 = vmatprep.subr.bf16.mxu0 0
        %1217 = vmatpush1.bf16.msra.mxu0 0
        %1218 = vmatprep.subr.bf16.mxu0 0
        %1219 = vmatpush1.bf16.msra.mxu0 0
        %1220 = vmatprep.subr.bf16.mxu0 0
        %1221 = vmatpush1.bf16.msra.mxu0 0
        %1222 = vmatprep.subr.bf16.mxu0 0
        %1223 = vmatpush1.bf16.msra.mxu0 0
        %1224 = vmatprep.subr.bf16.mxu0 0
        %1225 = vmatpush1.bf16.msra.mxu0 %v1208
        %1226 = vmatprep.subr.bf16.mxu0 0
        %1227 = vmatpush2.bf16.msra.mxu0 0
        %1228 = vmatprep.subr.bf16.mxu0 0
        %1229 = vmatpush2.bf16.msra.mxu0 0
        %1230 = vmatprep.subr.bf16.mxu0 0
        %1231 = vmatpush2.bf16.msra.mxu0 0
        %1232 = vmatprep.subr.bf16.mxu0 0
        %1233 = vmatpush2.bf16.msra.mxu0 0
        %1234 = vmatprep.subr.bf16.mxu0 0
        %1235 = vmatpush2.bf16.msra.mxu0 0
        %1236 = vmatprep.subr.bf16.mxu0 0
        %1237 = vmatpush2.bf16.msra.mxu0 0
        %1238 = vmatprep.subr.bf16.mxu0 0
        %1239 = vmatpush2.bf16.msra.mxu0 0
        %1240 = vmatprep.subr.bf16.mxu0 0
        %1241 = vmatpush2.bf16.msra.mxu0 0
        %1242 = vmatprep.mubr.bf16.mxu0 0
        %1243 = vmatmul.mubr.bf16.gmra.mxu0 %v1205
        %v1244 = vpop.f32.mrf.mxu0
        %v1245 = vadd.f32 0.0, %v1244
        %v1246 = vpop.f32.mrf.mxu0
        %v1247 = vpop.f32.mrf.mxu0
        %v1248 = vpop.f32.mrf.mxu0
        %1249 = vdwg.mxu0
        %1251 = vrot.lane.b32.xlu0 %v1245, 8
        %v1252 = vpop.permute.xlu0 %1251
        %vm1254 = vcmask 130112
        %1255 = vst.msk [vmem:[#allocation2] sm:$0xff] %vm1254, %v1252
        %1256 = vrot.lane.b32.xlu0 %v852, 112
        %v1257 = vpop.permute.xlu0 %1256
        %1258 = vrot.lane.b32.xlu0 %v957, 112
        %v1259 = vpop.permute.xlu0 %1258
        %v1261 = vsel %vm683, %v1257, 0
        %v1264 = vsel %vm683, %v1259, 0
        %1266 = vmatprep.subr.bf16.mxu0 0
        %1267 = vmatpush1.bf16.xpose.msra.mxu0 0
        %1268 = vmatprep.subr.bf16.mxu0 0
        %1269 = vmatpush1.bf16.xpose.msra.mxu0 0
        %1270 = vmatprep.subr.bf16.mxu0 0
        %1271 = vmatpush1.bf16.xpose.msra.mxu0 0
        %1272 = vmatprep.subr.bf16.mxu0 0
        %1273 = vmatpush1.bf16.xpose.msra.mxu0 0
        %1274 = vmatprep.subr.bf16.mxu0 0
        %1275 = vmatpush1.bf16.xpose.msra.mxu0 0
        %1276 = vmatprep.subr.bf16.mxu0 0
        %1277 = vmatpush1.bf16.xpose.msra.mxu0 0
        %1278 = vmatprep.subr.bf16.mxu0 0
        %1279 = vmatpush1.bf16.xpose.msra.mxu0 0
        %1280 = vmatprep.subr.bf16.mxu0 0
        %1281 = vmatpush1.bf16.xpose.msra.mxu0 %v1264
        %1282 = vmatprep.subr.bf16.mxu0 0
        %1283 = vmatpush2.bf16.xpose.msra.mxu0 0
        %1284 = vmatprep.subr.bf16.mxu0 0
        %1285 = vmatpush2.bf16.xpose.msra.mxu0 0
        %1286 = vmatprep.subr.bf16.mxu0 0
        %1287 = vmatpush2.bf16.xpose.msra.mxu0 0
        %1288 = vmatprep.subr.bf16.mxu0 0
        %1289 = vmatpush2.bf16.xpose.msra.mxu0 0
        %1290 = vmatprep.subr.bf16.mxu0 0
        %1291 = vmatpush2.bf16.xpose.msra.mxu0 0
        %1292 = vmatprep.subr.bf16.mxu0 0
        %1293 = vmatpush2.bf16.xpose.msra.mxu0 0
        %1294 = vmatprep.subr.bf16.mxu0 0
        %1295 = vmatpush2.bf16.xpose.msra.mxu0 0
        %1296 = vmatprep.subr.bf16.mxu0 0
        %1297 = vmatpush2.bf16.xpose.msra.mxu0 0
        %1298 = vmatprep.mubr.bf16.mxu0 0
        %1299 = vmatmul.mubr.bf16.gmra.mxu0 %v1261
        %v1300 = vpop.f32.mrf.mxu0
        %v1301 = vadd.f32 0.0, %v1300
        %v1302 = vpop.f32.mrf.mxu0
        %v1303 = vpop.f32.mrf.mxu0
        %v1304 = vpop.f32.mrf.mxu0
        %1305 = vdwg.mxu0
        %v1306 = vsel %vm1028, %v1301, -inf
        %v1307 = vsel %vm683, %v1306, -inf
        %1308 = vmax.xlane.f32.xlu0 %v1307
        %v1309 = vpop.xlane.xlu0 %1308
        %v1310 = vsub.f32 %v1306, %v1309
        %v1311 = vmul.f32 %v1310, 1.442695
        %v1312 = vpow.pop %v1311
        %v1313 = vsel %vm683, %v1312, 0.0
        %1314 = vadd.xlane.f32.xlu0 %v1313
        %v1315 = vpop.xlane.xlu0 %1314
        %v1316 = vrcp.pop %v1315
        %v1317 = vmul.f32 %v1312, %v1316
        %v1318 = vpack.c.bf16 %v1317, %v1317
        %1319 = vrot.lane.b32.xlu0 %v1021, 112
        %v1320 = vpop.permute.xlu0 %1319
        %v1322 = vsel %vm683, %v1318, 0
        %v1325 = vsel %vm1091, %v1320, 0
        %1327 = vmatprep.subr.bf16.mxu0 0
        %1328 = vmatpush1.bf16.msra.mxu0 0
        %1329 = vmatprep.subr.bf16.mxu0 0
        %1330 = vmatpush1.bf16.msra.mxu0 0
        %1331 = vmatprep.subr.bf16.mxu0 0
        %1332 = vmatpush1.bf16.msra.mxu0 0
        %1333 = vmatprep.subr.bf16.mxu0 0
        %1334 = vmatpush1.bf16.msra.mxu0 0
        %1335 = vmatprep.subr.bf16.mxu0 0
        %1336 = vmatpush1.bf16.msra.mxu0 0
        %1337 = vmatprep.subr.bf16.mxu0 0
        %1338 = vmatpush1.bf16.msra.mxu0 0
        %1339 = vmatprep.subr.bf16.mxu0 0
        %1340 = vmatpush1.bf16.msra.mxu0 0
        %1341 = vmatprep.subr.bf16.mxu0 0
        %1342 = vmatpush1.bf16.msra.mxu0 %v1325
        %1343 = vmatprep.subr.bf16.mxu0 0
        %1344 = vmatpush2.bf16.msra.mxu0 0
        %1345 = vmatprep.subr.bf16.mxu0 0
        %1346 = vmatpush2.bf16.msra.mxu0 0
        %1347 = vmatprep.subr.bf16.mxu0 0
        %1348 = vmatpush2.bf16.msra.mxu0 0
        %1349 = vmatprep.subr.bf16.mxu0 0
        %1350 = vmatpush2.bf16.msra.mxu0 0
        %1351 = vmatprep.subr.bf16.mxu0 0
        %1352 = vmatpush2.bf16.msra.mxu0 0
        %1353 = vmatprep.subr.bf16.mxu0 0
        %1354 = vmatpush2.bf16.msra.mxu0 0
        %1355 = vmatprep.subr.bf16.mxu0 0
        %1356 = vmatpush2.bf16.msra.mxu0 0
        %1357 = vmatprep.subr.bf16.mxu0 0
        %1358 = vmatpush2.bf16.msra.mxu0 0
        %1359 = vmatprep.mubr.bf16.mxu0 0
        %1360 = vmatmul.mubr.bf16.gmra.mxu0 %v1322
        %v1361 = vpop.f32.mrf.mxu0
        %v1362 = vadd.f32 0.0, %v1361
        %v1363 = vpop.f32.mrf.mxu0
        %v1364 = vpop.f32.mrf.mxu0
        %v1365 = vpop.f32.mrf.mxu0
        %1366 = vdwg.mxu0
        %1368 = vrot.lane.b32.xlu0 %v1362, 16
        %v1369 = vpop.permute.xlu0 %1368
        %vm1371 = vcmask 195712
        %1372 = vst.msk [vmem:[#allocation2] sm:$0xff] %vm1371, %v1369
        %1373 = vrot.lane.b32.xlu0 %v852, 104
        %v1374 = vpop.permute.xlu0 %1373
        %1375 = vrot.lane.b32.xlu0 %v957, 104
        %v1376 = vpop.permute.xlu0 %1375
        %v1378 = vsel %vm683, %v1374, 0
        %v1381 = vsel %vm683, %v1376, 0
        %1383 = vmatprep.subr.bf16.mxu0 0
        %1384 = vmatpush1.bf16.xpose.msra.mxu0 0
        %1385 = vmatprep.subr.bf16.mxu0 0
        %1386 = vmatpush1.bf16.xpose.msra.mxu0 0
        %1387 = vmatprep.subr.bf16.mxu0 0
        %1388 = vmatpush1.bf16.xpose.msra.mxu0 0
        %1389 = vmatprep.subr.bf16.mxu0 0
        %1390 = vmatpush1.bf16.xpose.msra.mxu0 0
        %1391 = vmatprep.subr.bf16.mxu0 0
        %1392 = vmatpush1.bf16.xpose.msra.mxu0 0
        %1393 = vmatprep.subr.bf16.mxu0 0
        %1394 = vmatpush1.bf16.xpose.msra.mxu0 0
        %1395 = vmatprep.subr.bf16.mxu0 0
        %1396 = vmatpush1.bf16.xpose.msra.mxu0 0
        %1397 = vmatprep.subr.bf16.mxu0 0
        %1398 = vmatpush1.bf16.xpose.msra.mxu0 %v1381
        %1399 = vmatprep.subr.bf16.mxu0 0
        %1400 = vmatpush2.bf16.xpose.msra.mxu0 0
        %1401 = vmatprep.subr.bf16.mxu0 0
        %1402 = vmatpush2.bf16.xpose.msra.mxu0 0
        %1403 = vmatprep.subr.bf16.mxu0 0
        %1404 = vmatpush2.bf16.xpose.msra.mxu0 0
        %1405 = vmatprep.subr.bf16.mxu0 0
        %1406 = vmatpush2.bf16.xpose.msra.mxu0 0
        %1407 = vmatprep.subr.bf16.mxu0 0
        %1408 = vmatpush2.bf16.xpose.msra.mxu0 0
        %1409 = vmatprep.subr.bf16.mxu0 0
        %1410 = vmatpush2.bf16.xpose.msra.mxu0 0
        %1411 = vmatprep.subr.bf16.mxu0 0
        %1412 = vmatpush2.bf16.xpose.msra.mxu0 0
        %1413 = vmatprep.subr.bf16.mxu0 0
        %1414 = vmatpush2.bf16.xpose.msra.mxu0 0
        %1415 = vmatprep.mubr.bf16.mxu0 0
        %1416 = vmatmul.mubr.bf16.gmra.mxu0 %v1378
        %v1417 = vpop.f32.mrf.mxu0
        %v1418 = vadd.f32 0.0, %v1417
        %v1419 = vpop.f32.mrf.mxu0
        %v1420 = vpop.f32.mrf.mxu0
        %v1421 = vpop.f32.mrf.mxu0
        %1422 = vdwg.mxu0
        %v1423 = vsel %vm1028, %v1418, -inf
        %v1424 = vsel %vm683, %v1423, -inf
        %1425 = vmax.xlane.f32.xlu0 %v1424
        %v1426 = vpop.xlane.xlu0 %1425
        %v1427 = vsub.f32 %v1423, %v1426
        %v1428 = vmul.f32 %v1427, 1.442695
        %v1429 = vpow.pop %v1428
        %v1430 = vsel %vm683, %v1429, 0.0
        %1431 = vadd.xlane.f32.xlu0 %v1430
        %v1432 = vpop.xlane.xlu0 %1431
        %v1433 = vrcp.pop %v1432
        %v1434 = vmul.f32 %v1429, %v1433
        %v1435 = vpack.c.bf16 %v1434, %v1434
        %1436 = vrot.lane.b32.xlu0 %v1021, 104
        %v1437 = vpop.permute.xlu0 %1436
        %v1439 = vsel %vm683, %v1435, 0
        %v1442 = vsel %vm1091, %v1437, 0
        %1444 = vmatprep.subr.bf16.mxu0 0
        %1445 = vmatpush1.bf16.msra.mxu0 0
        %1446 = vmatprep.subr.bf16.mxu0 0
        %1447 = vmatpush1.bf16.msra.mxu0 0
        %1448 = vmatprep.subr.bf16.mxu0 0
        %1449 = vmatpush1.bf16.msra.mxu0 0
        %1450 = vmatprep.subr.bf16.mxu0 0
        %1451 = vmatpush1.bf16.msra.mxu0 0
        %1452 = vmatprep.subr.bf16.mxu0 0
        %1453 = vmatpush1.bf16.msra.mxu0 0
        %1454 = vmatprep.subr.bf16.mxu0 0
        %1455 = vmatpush1.bf16.msra.mxu0 0
        %1456 = vmatprep.subr.bf16.mxu0 0
        %1457 = vmatpush1.bf16.msra.mxu0 0
        %1458 = vmatprep.subr.bf16.mxu0 0
        %1459 = vmatpush1.bf16.msra.mxu0 %v1442
        %1460 = vmatprep.subr.bf16.mxu0 0
        %1461 = vmatpush2.bf16.msra.mxu0 0
        %1462 = vmatprep.subr.bf16.mxu0 0
        %1463 = vmatpush2.bf16.msra.mxu0 0
        %1464 = vmatprep.subr.bf16.mxu0 0
        %1465 = vmatpush2.bf16.msra.mxu0 0
        %1466 = vmatprep.subr.bf16.mxu0 0
        %1467 = vmatpush2.bf16.msra.mxu0 0
        %1468 = vmatprep.subr.bf16.mxu0 0
        %1469 = vmatpush2.bf16.msra.mxu0 0
        %1470 = vmatprep.subr.bf16.mxu0 0
        %1471 = vmatpush2.bf16.msra.mxu0 0
        %1472 = vmatprep.subr.bf16.mxu0 0
        %1473 = vmatpush2.bf16.msra.mxu0 0
        %1474 = vmatprep.subr.bf16.mxu0 0
        %1475 = vmatpush2.bf16.msra.mxu0 0
        %1476 = vmatprep.mubr.bf16.mxu0 0
        %1477 = vmatmul.mubr.bf16.gmra.mxu0 %v1439
        %v1478 = vpop.f32.mrf.mxu0
        %v1479 = vadd.f32 0.0, %v1478
        %v1480 = vpop.f32.mrf.mxu0
        %v1481 = vpop.f32.mrf.mxu0
        %v1482 = vpop.f32.mrf.mxu0
        %1483 = vdwg.mxu0
        %1485 = vrot.lane.b32.xlu0 %v1479, 24
        %v1486 = vpop.permute.xlu0 %1485
        %vm1488 = vcmask 261312
        %1489 = vst.msk [vmem:[#allocation2] sm:$0xff] %vm1488, %v1486
        %v1490 = vld [vmem:[#allocation2] sm:$0xff]
        %v1491 = vpack.c.bf16 %v1490, %v1490
        %v1492 = vld [vmem:[#allocation12] sm:$0xf]
        %v1493 = vld [vmem:[#allocation12 + $0x4] sm:$0xf]
        %v1494 = vld [vmem:[#allocation12 + $0x8] sm:$0xf]
        %v1495 = vld [vmem:[#allocation12 + $0xc] sm:$0xf]
        %v1496 = vld [vmem:[#allocation14] sm:$0x1]
        %v1498 = vlaneseq
        %v1499 = vshrl.u32 %v1498, 7
        %v1500 = vsub.s32 0, %v1499
        %v1501 = vrot.slane %v1496, %v1500
        %v1507 = vunpack.c.l.b16 %v1492
        %v1508 = vunpack.c.l.b16 %v1493
        %v1509 = vunpack.c.l.b16 %v1494
        %v1510 = vunpack.c.l.b16 %v1495
        %v1511 = vpack.c.b16 %v1508, %v1507
        %v1512 = vpack.c.b16 %v1510, %v1509
        %v1516 = vsel %vm626, %v1491, 0
        %1518 = vmatprep.subr.bf16.mxu0 0
        %1519 = vmatpush1.bf16.msra.mxu0 0
        %1520 = vmatprep.subr.bf16.mxu0 0
        %1521 = vmatpush1.bf16.msra.mxu0 0
        %1522 = vmatprep.subr.bf16.mxu0 0
        %1523 = vmatpush1.bf16.msra.mxu0 0
        %1524 = vmatprep.subr.bf16.mxu0 0
        %1525 = vmatpush1.bf16.msra.mxu0 0
        %1526 = vmatprep.subr.bf16.mxu0 0
        %1527 = vmatpush1.bf16.msra.mxu0 0
        %1528 = vmatprep.subr.bf16.mxu0 0
        %1529 = vmatpush1.bf16.msra.mxu0 0
        %1530 = vmatprep.subr.bf16.mxu0 0
        %1531 = vmatpush1.bf16.msra.mxu0 %v1512
        %1532 = vmatprep.subr.bf16.mxu0 0
        %1533 = vmatpush1.bf16.msra.mxu0 %v1511
        %1534 = vmatprep.subr.bf16.mxu0 0
        %1535 = vmatpush2.bf16.msra.mxu0 0
        %1536 = vmatprep.subr.bf16.mxu0 0
        %1537 = vmatpush2.bf16.msra.mxu0 0
        %1538 = vmatprep.subr.bf16.mxu0 0
        %1539 = vmatpush2.bf16.msra.mxu0 0
        %1540 = vmatprep.subr.bf16.mxu0 0
        %1541 = vmatpush2.bf16.msra.mxu0 0
        %1542 = vmatprep.subr.bf16.mxu0 0
        %1543 = vmatpush2.bf16.msra.mxu0 0
        %1544 = vmatprep.subr.bf16.mxu0 0
        %1545 = vmatpush2.bf16.msra.mxu0 0
        %1546 = vmatprep.subr.bf16.mxu0 0
        %1547 = vmatpush2.bf16.msra.mxu0 0
        %1548 = vmatprep.subr.bf16.mxu0 0
        %1549 = vmatpush2.bf16.msra.mxu0 0
        %1550 = vmatprep.mubr.bf16.mxu0 0
        %1551 = vmatmul.mubr.bf16.gmra.mxu0 %v1516
        %v1552 = vpop.f32.mrf.mxu0
        %v1553 = vadd.f32 %v1501, %v1552
        %v1554 = vpop.f32.mrf.mxu0
        %v1555 = vpop.f32.mrf.mxu0
        %v1556 = vpop.f32.mrf.mxu0
        %1557 = vdwg.mxu0
        %v1558 = vadd.f32 %v625, %v1553
        %v1559 = vld [vmem:[#allocation8] sm:$0x1]
        %v1560 = vld [vmem:[#allocation9] sm:$0x1]
        %v1561 = vsel %vm626, %v1558, 0.0
        %1562 = vadd.xlane.f32.xlu0 %v1561
        %v1563 = vpop.xlane.xlu0 %1562
        %v1564 = vmul.f32 %v1563, %v630
        %v1565 = vsub.f32 %v1558, %v1564
        %v1566 = vmul.f32 %v1565, %v1565
        %v1567 = vsel %vm626, %v1566, 0.0
        %1568 = vadd.xlane.f32.xlu0 %v1567
        %v1569 = vpop.xlane.xlu0 %1568
        %v1570 = vmul.f32 %v1569, %v630
        %v1571 = vadd.f32 %v1570, 1e-05
        %v1572 = vrsqrt.pop %v1571
        %v1573 = vmul.f32 %v1565, %v1572
        %v1575 = vlaneseq
        %v1576 = vshrl.u32 %v1575, 7
        %v1577 = vsub.s32 0, %v1576
        %v1578 = vrot.slane %v1559, %v1577
        %v1580 = vmul.f32 %v1573, %v1578
        %v1582 = vlaneseq
        %v1583 = vshrl.u32 %v1582, 7
        %v1584 = vsub.s32 0, %v1583
        %v1585 = vrot.slane %v1560, %v1584
        %v1587 = vadd.f32 %v1580, %v1585
        %v1588 = vpack.c.bf16 %v1587, %v1587
        %v1589 = vld [vmem:[%s9] sm:$0xf]
        %v1590 = vld [vmem:[%s9 + $0x4] sm:$0xf]
        %v1591 = vld [vmem:[%s9 + $0x8] sm:$0xf]
        %v1592 = vld [vmem:[%s9 + $0xc] sm:$0xf]
        %v1593 = vld [vmem:[%s10] sm:$0x1]
        %v1595 = vlaneseq
        %v1596 = vshrl.u32 %v1595, 7
        %v1597 = vsub.s32 0, %v1596
        %v1598 = vrot.slane %v1593, %v1597
        %v1604 = vunpack.c.l.b16 %v1589
        %v1605 = vunpack.c.l.b16 %v1590
        %v1606 = vunpack.c.l.b16 %v1591
        %v1607 = vunpack.c.l.b16 %v1592
        %v1608 = vpack.c.b16 %v1605, %v1604
        %v1609 = vpack.c.b16 %v1607, %v1606
        %v1613 = vsel %vm626, %v1588, 0
        %1615 = vmatprep.subr.bf16.mxu0 0
        %1616 = vmatpush1.bf16.msra.mxu0 0
        %1617 = vmatprep.subr.bf16.mxu0 0
        %1618 = vmatpush1.bf16.msra.mxu0 0
        %1619 = vmatprep.subr.bf16.mxu0 0
        %1620 = vmatpush1.bf16.msra.mxu0 0
        %1621 = vmatprep.subr.bf16.mxu0 0
        %1622 = vmatpush1.bf16.msra.mxu0 0
        %1623 = vmatprep.subr.bf16.mxu0 0
        %1624 = vmatpush1.bf16.msra.mxu0 0
        %1625 = vmatprep.subr.bf16.mxu0 0
        %1626 = vmatpush1.bf16.msra.mxu0 0
        %1627 = vmatprep.subr.bf16.mxu0 0
        %1628 = vmatpush1.bf16.msra.mxu0 %v1609
        %1629 = vmatprep.subr.bf16.mxu0 0
        %1630 = vmatpush1.bf16.msra.mxu0 %v1608
        %1631 = vmatprep.subr.bf16.mxu0 0
        %1632 = vmatpush2.bf16.msra.mxu0 0
        %1633 = vmatprep.subr.bf16.mxu0 0
        %1634 = vmatpush2.bf16.msra.mxu0 0
        %1635 = vmatprep.subr.bf16.mxu0 0
        %1636 = vmatpush2.bf16.msra.mxu0 0
        %1637 = vmatprep.subr.bf16.mxu0 0
        %1638 = vmatpush2.bf16.msra.mxu0 0
        %1639 = vmatprep.subr.bf16.mxu0 0
        %1640 = vmatpush2.bf16.msra.mxu0 0
        %1641 = vmatprep.subr.bf16.mxu0 0
        %1642 = vmatpush2.bf16.msra.mxu0 0
        %1643 = vmatprep.subr.bf16.mxu0 0
        %1644 = vmatpush2.bf16.msra.mxu0 0
        %1645 = vmatprep.subr.bf16.mxu0 0
        %1646 = vmatpush2.bf16.msra.mxu0 0
        %1647 = vmatprep.mubr.bf16.mxu0 0
        %1648 = vmatmul.mubr.bf16.gmra.mxu0 %v1613
        %v1649 = vpop.f32.mrf.mxu0
        %v1650 = vadd.f32 %v1598, %v1649
        %v1651 = vpop.f32.mrf.mxu0
        %v1652 = vpop.f32.mrf.mxu0
        %v1653 = vpop.f32.mrf.mxu0
        %1654 = vdwg.mxu0
        %v1655 = vmul.f32 %v1650, 0.5
        %v1656 = vmul.f32 %v1650, 0.70710677
        %v1657 = verf.f32.pop %v1656
        %v1658 = vadd.f32 %v1657, 1.0
        %v1659 = vmul.f32 %v1655, %v1658
        %v1660 = vpack.c.bf16 %v1659, %v1659
        %v1661 = vld [vmem:[%s11] sm:$0xf]
        %v1662 = vld [vmem:[%s11 + $0x4] sm:$0xf]
        %v1663 = vld [vmem:[%s11 + $0x8] sm:$0xf]
        %v1664 = vld [vmem:[%s11 + $0xc] sm:$0xf]
        %v1665 = vld [vmem:[%s11 + $0x10] sm:$0xf]
        %v1666 = vld [vmem:[%s11 + $0x14] sm:$0xf]
        %v1667 = vld [vmem:[%s11 + $0x18] sm:$0xf]
        %v1668 = vld [vmem:[%s11 + $0x1c] sm:$0xf]
        %v1669 = vld [vmem:[#allocation15] sm:$0x1]
        %v1671 = vlaneseq
        %v1672 = vshrl.u32 %v1671, 7
        %v1673 = vsub.s32 0, %v1672
        %v1674 = vrot.slane %v1669, %v1673
        %v1684 = vunpack.c.l.b16 %v1661
        %v1685 = vunpack.c.l.b16 %v1662
        %v1686 = vunpack.c.l.b16 %v1663
        %v1687 = vunpack.c.l.b16 %v1664
        %v1688 = vunpack.c.l.b16 %v1665
        %v1689 = vunpack.c.l.b16 %v1666
        %v1690 = vunpack.c.l.b16 %v1667
        %v1691 = vunpack.c.l.b16 %v1668
        %v1692 = vpack.c.b16 %v1685, %v1684
        %v1693 = vpack.c.b16 %v1687, %v1686
        %v1694 = vpack.c.b16 %v1689, %v1688
        %v1695 = vpack.c.b16 %v1691, %v1690
        %vm1700 = vcmask 523264
        %v1702 = vsel %vm1700, %v1660, 0
        %1704 = vmatprep.subr.bf16.mxu0 0
        %1705 = vmatpush1.bf16.msra.mxu0 0
        %1706 = vmatprep.subr.bf16.mxu0 0
        %1707 = vmatpush1.bf16.msra.mxu0 0
        %1708 = vmatprep.subr.bf16.mxu0 0
        %1709 = vmatpush1.bf16.msra.mxu0 0
        %1710 = vmatprep.subr.bf16.mxu0 0
        %1711 = vmatpush1.bf16.msra.mxu0 0
        %1712 = vmatprep.subr.bf16.mxu0 0
        %1713 = vmatpush1.bf16.msra.mxu0 %v1695
        %1714 = vmatprep.subr.bf16.mxu0 0
        %1715 = vmatpush1.bf16.msra.mxu0 %v1694
        %1716 = vmatprep.subr.bf16.mxu0 0
        %1717 = vmatpush1.bf16.msra.mxu0 %v1693
        %1718 = vmatprep.subr.bf16.mxu0 0
        %1719 = vmatpush1.bf16.msra.mxu0 %v1692
        %1720 = vmatprep.subr.bf16.mxu0 0
        %1721 = vmatpush2.bf16.msra.mxu0 0
        %1722 = vmatprep.subr.bf16.mxu0 0
        %1723 = vmatpush2.bf16.msra.mxu0 0
        %1724 = vmatprep.subr.bf16.mxu0 0
        %1725 = vmatpush2.bf16.msra.mxu0 0
        %1726 = vmatprep.subr.bf16.mxu0 0
        %1727 = vmatpush2.bf16.msra.mxu0 0
        %1728 = vmatprep.subr.bf16.mxu0 0
        %1729 = vmatpush2.bf16.msra.mxu0 0
        %1730 = vmatprep.subr.bf16.mxu0 0
        %1731 = vmatpush2.bf16.msra.mxu0 0
        %1732 = vmatprep.subr.bf16.mxu0 0
        %1733 = vmatpush2.bf16.msra.mxu0 0
        %1734 = vmatprep.subr.bf16.mxu0 0
        %1735 = vmatpush2.bf16.msra.mxu0 0
        %1736 = vmatprep.mubr.bf16.mxu0 0
        %1737 = vmatmul.mubr.bf16.gmra.mxu0 %v1702
        %v1738 = vpop.f32.mrf.mxu0
        %v1739 = vadd.f32 %v1674, %v1738
        %v1740 = vpop.f32.mrf.mxu0
        %v1741 = vpop.f32.mrf.mxu0
        %v1742 = vpop.f32.mrf.mxu0
        %1743 = vdwg.mxu0
        %v1744 = vadd.f32 %v1558, %v1739
        %1745 = vst.msk [vmem:[%s614] sm:$0xff] %vm626, %v1744
        %s1746 = sand.u32 %s376, 1
        %s1747 = scalar_lea.sflag [#allocation5], %s1746
        %s1748 = sand.u32 %s376, 1
        %s1749 = smul.addr %s1748, 8
        %s1750 = scalar_lea.vmem [#allocation18], %s1749
        // Predicated region
        $region117: #{tpu_custom_call.1} parent=79 // pred_check
          %p1751 = pneg %p386
        $region118: #{tpu_custom_call.1} parent=79 // pred_check_branch
          %1753 = sbr.rel (%p1751) target = $region120
        $region119: #{tpu_custom_call.1} parent=79 // pred_region
          %s1755 = ssub.s32 128, 128
          %1756 = vsyncadd %s1747, %s1755
          %s1757 = sadd.s32 %s39, %s38
          %s1758 = smul.addr %s1757, 128
          %s1759 = scalar_lea.hbm %s15, %s1758
          %s1761 = sshll.u32 %s1750, 4
          %s1762 = int_to_ptr.vmem [resolvable:$true] %s1761
          %1764 = dma.vmem_to_hbm [thread:$0]  %s1762, 128, %s1759, %s1747
        $region120: #{tpu_custom_call.1} parent=79 // pred_fallthru
          _
      $region80: #{tpu_custom_call.1} parent=5 // pred_fallthru
        _
      %p1765 = scmp.le.s32.totalorder 2, %s29
      // Predicated region
      $region121: #{tpu_custom_call.1} parent=5 // pred_check
        %p1766 = pneg %p1765
      $region122: #{tpu_custom_call.1} parent=5 // pred_check_branch
        %1768 = sbr.rel (%p1766) target = $region124
      $region123: #{tpu_custom_call.1} parent=5 // pred_region
        %s1769 = ssub.s32 %s29, 2
        // Predicated region
        $region125: #{tpu_custom_call.1} parent=123 // pred_check
          %p1770 = pneg %p392
        $region126: #{tpu_custom_call.1} parent=123 // pred_check_branch
          %1772 = sbr.rel (%p1770) target = $region128
        $region127: #{tpu_custom_call.1} parent=123 // pred_region
          %s1773 = sand.u32 %s377, 1
          %s1774 = scalar_lea.sflag [#allocation5], %s1773
          %s1775 = sand.u32 %s377, 1
          %s1776 = smul.addr %s1775, 8
          %s1777 = scalar_lea.vmem [#allocation18], %s1776
          %1778 = dma.done %s1774, 128
        $region128: #{tpu_custom_call.1} parent=123 // pred_fallthru
          _
      $region124: #{tpu_custom_call.1} parent=5 // pred_fallthru
        _
    $region6: #{tpu_custom_call.1} parent=1 // loop_footer
      %s33 = sadd.s32 1, %s29
    $region7: #{tpu_custom_call.1} parent=1 // loop_footer_branch
      %28 = sbr.rel target = $region3
    $region8: #{tpu_custom_call.1} parent=1 // loop_exit
      _
    %1779 = vsyncpa [#allocation4], 1
    %s1780 = scalar_lea.sflag [#allocation4], 1
    %1781 = vsyncpa %s1780, 1
    %1782 = vsyncpa [#allocation7], 1
    %1783 = vsyncpa [#allocation10], 1
    %1784 = vsyncpa [#allocation13], 1
    %1785 = vsyncpa [#allocation16], 1
    %1786 = vsyncpa [#allocation5], 1
    %s1787 = scalar_lea.sflag [#allocation5], 1
    %1788 = vsyncpa %s1787, 1

</llo_original>
